<compile_context>
chip_gen: v7x
topology: tpu7x:2x2x1
jax: 0.10.0
libtpu: 0.0.40
codegen_flags: <defaults>
</compile_context>

<pallas_src>
import functools
import math

import jax
import jax.numpy as jnp
from jax import lax
from jax.experimental import pallas as pl
from jax.experimental.pallas import tpu as pltpu


# ---------------------------------------------------------------------------
# Fused LSTM kernel: one grid step == one tile of TT timesteps.
#   x_ref  : (TT, B, I)  f32  raw inputs for this time tile
#   wx_ref : (I, 4H)     bf16 x2h weight (transposed), grid-resident
#   wh_ref : (H, 4H)     bf16 h2h weight (transposed), grid-resident
#   b_ref  : (1, 4H)     f32  combined bias (bx + bh), grid-resident
#   h0_ref : (B, H)      f32  initial hidden state, grid-resident
#   c0_ref : (B, H)      f32  initial cell state, grid-resident
#   out_ref: (TT, B, H)  f32  hidden states for this time tile
#   h_ref, c_ref : (B, H) f32 VMEM scratch carrying state across grid steps
# ---------------------------------------------------------------------------
def _lstm_fused_kernel(x_ref, wx_ref, wh_ref, b_ref, h0_ref, c0_ref,
                       out_ref, h_ref, c_ref, *, tt, hidden_size):
    H = hidden_size

    @pl.when(pl.program_id(0) == 0)
    def _():
        h_ref[...] = h0_ref[...]
        c_ref[...] = c0_ref[...]

    def step(t, carry):
        # Input projection fused here: x tile is already in VMEM, so this is
        # MXU work only -- no xg HBM intermediate.
        x_t = x_ref[t].astype(wx_ref.dtype)                       # (B, I) bf16
        h_t = h_ref[...].astype(wh_ref.dtype)                     # (B, H) bf16
        gates = (jnp.dot(x_t, wx_ref[...],
                         preferred_element_type=jnp.float32)
                 + jnp.dot(h_t, wh_ref[...],
                           preferred_element_type=jnp.float32)
                 + b_ref[...])                                    # (B, 4H) f32

        # sigmoid(z) = 0.5*(tanh(z/2)+1): transcendental on the EUP slot,
        # applied lane-dense over the full (B, 4H=128) gate slab.
        sig = 0.5 * (jnp.tanh(0.5 * gates) + 1.0)
        tnh = jnp.tanh(gates)

        i_g = sig[:, 0 * H:1 * H]
        f_g = sig[:, 1 * H:2 * H]
        g_g = tnh[:, 2 * H:3 * H]
        o_g = sig[:, 3 * H:4 * H]

        c_new = c_ref[...] * f_g + i_g * g_g
        h_new = o_g * jnp.tanh(c_new)

        c_ref[...] = c_new
        h_ref[...] = h_new
        out_ref[t] = h_new.astype(out_ref.dtype)   # write to the VMEM out block
        return carry

    lax.fori_loop(0, tt, step, 0, unroll=min(tt, 8))


def _pick_time_tile(T, B, I, H, vmem_budget=4 << 20):
    """Largest divisor of T whose double-buffered x/out blocks fit the budget.

    Budget is conservative (4 MiB) so the kernel is safe on v7x's smaller
    VMEM as well as v5e/v6e.
    """
    per_step_bytes = B * (I + H) * 4 * 2   # f32 x-block + out-block, 2x buffered
    cap = max(1, vmem_budget // max(per_step_bytes, 1))
    tt = min(T, cap)
    while T % tt != 0:
        tt -= 1
    return tt


# ---------------------------------------------------------------------------
# Public wrapper: LSTM.forward
#   x      : (T, B, I)  (or (B, T, I) if batch_first=True)
#   params : (wx (4H, I), bx (4H,), wh (4H, H), bh (4H,))  -- PyTorch layouts
#   hidden : optional (h0, c0), each (num_directions, B, H) like PyTorch
# Returns (T, B, H) (or (B, T, H) if batch_first=True).
# ---------------------------------------------------------------------------
def lstm_forward(x, params, hidden=None, batch_first=False):
    wx, bx, wh, bh = params
    if batch_first:
        x = jnp.transpose(x, (1, 0, 2))
    T, B, I = x.shape
    H = wh.shape[1]
    G = 4 * H

    if hidden is None:
        h0 = jnp.zeros((B, H), jnp.float32)
        c0 = jnp.zeros((B, H), jnp.float32)
    else:
        h0 = hidden[0][0].astype(jnp.float32)
        c0 = hidden[1][0].astype(jnp.float32)

    x = x.astype(jnp.float32)
    wxT = jnp.transpose(wx).astype(jnp.bfloat16)          # (I, 4H)
    whT = jnp.transpose(wh).astype(jnp.bfloat16)          # (H, 4H)
    bias = (bx + bh).astype(jnp.float32).reshape(1, G)    # (1, 4H)

    tt = _pick_time_tile(T, B, I, H)
    nt = T // tt

    outs = pl.pallas_call(
        functools.partial(_lstm_fused_kernel, tt=tt, hidden_size=H),
        out_shape=jax.ShapeDtypeStruct((T, B, H), jnp.float32),
        grid=(nt,),
        in_specs=[
            pl.BlockSpec((tt, B, I), lambda n: (n, 0, 0)),   # x time tile
            pl.BlockSpec((I, G), lambda n: (0, 0)),           # wxT (resident)
            pl.BlockSpec((H, G), lambda n: (0, 0)),           # whT (resident)
            pl.BlockSpec((1, G), lambda n: (0, 0)),            # bias (resident)
            pl.BlockSpec((B, H), lambda n: (0, 0)),            # h0 (resident)
            pl.BlockSpec((B, H), lambda n: (0, 0)),            # c0 (resident)
        ],
        out_specs=pl.BlockSpec((tt, B, H), lambda n: (n, 0, 0)),
        scratch_shapes=[pltpu.VMEM((B, H), jnp.float32),
                        pltpu.VMEM((B, H), jnp.float32)],
        compiler_params=pltpu.CompilerParams(
            dimension_semantics=("arbitrary",)),   # sequential recurrence
    )(x, wxT, whT, bias, h0, c0)

    if batch_first:
        outs = jnp.transpose(outs, (1, 0, 2))
    return outs


# ---------------------------------------------------------------------------
# Parameter init mirroring LSTMCell.reset_parameters:
#   every parameter ~ U(-1/sqrt(H), 1/sqrt(H))
# ---------------------------------------------------------------------------
def init_params(key, input_size, hidden_size):
    std = 1.0 / math.sqrt(hidden_size)
    k1, k2, k3, k4 = jax.random.split(key, 4)
    wx = jax.random.uniform(k1, (4 * hidden_size, input_size), jnp.float32, -std, std)
    bx = jax.random.uniform(k2, (4 * hidden_size,), jnp.float32, -std, std)
    wh = jax.random.uniform(k3, (4 * hidden_size, hidden_size), jnp.float32, -std, std)
    bh = jax.random.uniform(k4, (4 * hidden_size,), jnp.float32, -std, std)
    return wx, bx, wh, bh


# ---------------------------------------------------------------------------
# Pure-JAX f32 reference (sanity check of the Pallas path).
# ---------------------------------------------------------------------------
def ref_forward(x, params, hidden=None, batch_first=False):
    wx, bx, wh, bh = params
    if batch_first:
        x = jnp.transpose(x, (1, 0, 2))
    T, B, I = x.shape
    H = wh.shape[1]
    if hidden is None:
        h = jnp.zeros((B, H), jnp.float32)
        c = jnp.zeros((B, H), jnp.float32)
    else:
        h, c = hidden[0][0], hidden[1][0]

    def step(carry, xt):
        h, c = carry
        gates = xt @ wx.T + bx + h @ wh.T + bh
        i_g = jax.nn.sigmoid(gates[:, 0 * H:1 * H])
        f_g = jax.nn.sigmoid(gates[:, 1 * H:2 * H])
        g_g = jnp.tanh(gates[:, 2 * H:3 * H])
        o_g = jax.nn.sigmoid(gates[:, 3 * H:4 * H])
        c = c * f_g + i_g * g_g
        h = o_g * jnp.tanh(c)
        return (h, c), h

    _, outs = jax.lax.scan(step, (h, c), x)
    if batch_first:
        outs = jnp.transpose(outs, (1, 0, 2))
    return outs


if __name__ == "__main__":
    T, B, I, H = 8, 2, 16, 32          # seq=8, batch=2, input=16, hidden=32
    key = jax.random.PRNGKey(0)
    pkey, xkey = jax.random.split(key)
    params = init_params(pkey, I, H)

    # batch_first=False (module default): x is (seq, batch, input)
    x = jax.random.normal(xkey, (T, B, I), jnp.float32)

    out = lstm_forward(x, params)      # hidden=None -> zero initial state
    out = jax.block_until_ready(out)

    ref = ref_forward(x, params)
    assert out.shape == ref.shape == (T, B, H), (out.shape, ref.shape)
    assert jnp.allclose(out, ref, atol=3e-2, rtol=3e-2), \
        float(jnp.max(jnp.abs(out - ref)))

    print("KERNEL_OK")
</pallas_src>

<mosaic_0001>
module attributes {stable_mosaic.version = 11 : i64} {
  func.func @_lstm_fused_kernel(%arg0: i32, %arg1: memref<8x2x16xf32, #tpu.memory_space<vmem>>, %arg2: memref<16x128xbf16, #tpu.memory_space<vmem>>, %arg3: memref<32x128xbf16, #tpu.memory_space<vmem>>, %arg4: memref<1x128xf32, #tpu.memory_space<vmem>>, %arg5: memref<2x32xf32, #tpu.memory_space<vmem>>, %arg6: memref<2x32xf32, #tpu.memory_space<vmem>>, %arg7: memref<8x2x32xf32, #tpu.memory_space<vmem>>, %arg8: memref<2x32xf32, #tpu.memory_space<vmem>>, %arg9: memref<2x32xf32, #tpu.memory_space<vmem>>) attributes {dimension_semantics = [#tpu.dimension_semantics<arbitrary>], iteration_bounds = array<i64: 1>, scalar_prefetch = 0 : i64, scratch_operands = 2 : i64, tpu.core_type = #tpu.core_type<tc>, window_params = [{transform_indices = @transform_0, window_bounds = array<i64: 8, 2, 16>}, {pipeline_mode = #tpu.pipeline_mode<synchronous>, transform_indices = @transform_1, window_bounds = array<i64: 16, 128>}, {pipeline_mode = #tpu.pipeline_mode<synchronous>, transform_indices = @transform_2, window_bounds = array<i64: 32, 128>}, {pipeline_mode = #tpu.pipeline_mode<synchronous>, transform_indices = @transform_3, window_bounds = array<i64: 1, 128>}, {pipeline_mode = #tpu.pipeline_mode<synchronous>, transform_indices = @transform_4, window_bounds = array<i64: 2, 32>}, {pipeline_mode = #tpu.pipeline_mode<synchronous>, transform_indices = @transform_5, window_bounds = array<i64: 2, 32>}, {transform_indices = @transform_6, window_bounds = array<i64: 8, 2, 32>}]} {
    %c0_i32 = arith.constant 0 : i32
    %0 = arith.cmpi eq, %arg0, %c0_i32 : i32
    %1 = arith.extui %0 : i1 to i32
    %c0_i32_0 = arith.constant 0 : i32
    %2 = arith.cmpi ne, %1, %c0_i32_0 : i32
    scf.if %2 {
      %c0_184 = arith.constant 0 : index
      %c0_185 = arith.constant 0 : index
      %307 = vector.load %arg5[%c0_184, %c0_185] : memref<2x32xf32, #tpu.memory_space<vmem>>, vector<2x32xf32>
      %c0_186 = arith.constant 0 : index
      %c0_187 = arith.constant 0 : index
      %308 = vector.load %arg8[%c0_186, %c0_187] : memref<2x32xf32, #tpu.memory_space<vmem>>, vector<2x32xf32>
      tpu.vector_store %arg8[%c0_186, %c0_187], %307 {strides = array<i32>} : memref<2x32xf32, #tpu.memory_space<vmem>>, vector<2x32xf32>,
      %c0_188 = arith.constant 0 : index
      %c0_189 = arith.constant 0 : index
      %309 = vector.load %arg6[%c0_188, %c0_189] : memref<2x32xf32, #tpu.memory_space<vmem>>, vector<2x32xf32>
      %c0_190 = arith.constant 0 : index
      %c0_191 = arith.constant 0 : index
      %310 = vector.load %arg9[%c0_190, %c0_191] : memref<2x32xf32, #tpu.memory_space<vmem>>, vector<2x32xf32>
      tpu.vector_store %arg9[%c0_190, %c0_191], %309 {strides = array<i32>} : memref<2x32xf32, #tpu.memory_space<vmem>>, vector<2x32xf32>,
    } else {
    }
    %c0_i32_1 = arith.constant 0 : i32
    %3 = arith.index_cast %c0_i32_1 : i32 to index
    %c0 = arith.constant 0 : index
    %c0_2 = arith.constant 0 : index
    %4 = vector.load %arg1[%3, %c0, %c0_2] : memref<8x2x16xf32, #tpu.memory_space<vmem>>, vector<1x2x16xf32>
    %5 = vector.shape_cast %4 : vector<1x2x16xf32> to vector<2x16xf32>
    %6 = arith.truncf %5 : vector<2x16xf32> to vector<2x16xbf16>
    %c0_3 = arith.constant 0 : index
    %c0_4 = arith.constant 0 : index
    %7 = vector.load %arg8[%c0_3, %c0_4] : memref<2x32xf32, #tpu.memory_space<vmem>>, vector<2x32xf32>
    %8 = arith.truncf %7 : vector<2x32xf32> to vector<2x32xbf16>
    %c0_5 = arith.constant 0 : index
    %c0_6 = arith.constant 0 : index
    %9 = vector.load %arg2[%c0_5, %c0_6] : memref<16x128xbf16, #tpu.memory_space<vmem>>, vector<16x128xbf16>
    %cst = arith.constant dense<0.000000e+00> : vector<2x128xf32>
    %10 = tpu.matmul %6, %9, %cst {dimension_numbers = #tpu.dot_dimension_numbers<[1], [0], [0], [1], [0, 0, 1, 1], [], []>} : vector<2x16xbf16>, vector<16x128xbf16>, vector<2x128xf32> -> vector<2x128xf32>
    %c0_7 = arith.constant 0 : index
    %c0_8 = arith.constant 0 : index
    %11 = vector.load %arg3[%c0_7, %c0_8] : memref<32x128xbf16, #tpu.memory_space<vmem>>, vector<32x128xbf16>
    %cst_9 = arith.constant dense<0.000000e+00> : vector<2x128xf32>
    %12 = tpu.matmul %8, %11, %cst_9 {dimension_numbers = #tpu.dot_dimension_numbers<[1], [0], [0], [1], [0, 0, 1, 1], [], []>} : vector<2x32xbf16>, vector<32x128xbf16>, vector<2x128xf32> -> vector<2x128xf32>
    %13 = arith.addf %10, %12 : vector<2x128xf32>
    %c0_10 = arith.constant 0 : index
    %c0_11 = arith.constant 0 : index
    %14 = vector.load %arg4[%c0_10, %c0_11] : memref<1x128xf32, #tpu.memory_space<vmem>>, vector<1x128xf32>
    %15 = vector.broadcast %14 : vector<1x128xf32> to vector<2x128xf32>
    %16 = arith.addf %13, %15 : vector<2x128xf32>
    %cst_12 = arith.constant 5.000000e-01 : f32
    %17 = vector.broadcast %cst_12 : f32 to vector<2x128xf32>
    %18 = arith.mulf %17, %16 : vector<2x128xf32>
    %19 = math.tanh %18 : vector<2x128xf32>
    %cst_13 = arith.constant 1.000000e+00 : f32
    %20 = vector.broadcast %cst_13 : f32 to vector<2x128xf32>
    %21 = arith.addf %19, %20 : vector<2x128xf32>
    %cst_14 = arith.constant 5.000000e-01 : f32
    %22 = vector.broadcast %cst_14 : f32 to vector<2x128xf32>
    %23 = arith.mulf %22, %21 : vector<2x128xf32>
    %24 = math.tanh %16 : vector<2x128xf32>
    %25 = vector.extract_strided_slice %23 {offsets = [0, 0], sizes = [2, 32], strides = [1, 1]} : vector<2x128xf32> to vector<2x32xf32>
    %26 = vector.extract_strided_slice %23 {offsets = [0, 32], sizes = [2, 32], strides = [1, 1]} : vector<2x128xf32> to vector<2x32xf32>
    %27 = vector.extract_strided_slice %24 {offsets = [0, 64], sizes = [2, 32], strides = [1, 1]} : vector<2x128xf32> to vector<2x32xf32>
    %28 = vector.extract_strided_slice %23 {offsets = [0, 96], sizes = [2, 32], strides = [1, 1]} : vector<2x128xf32> to vector<2x32xf32>
    %c0_15 = arith.constant 0 : index
    %c0_16 = arith.constant 0 : index
    %29 = vector.load %arg9[%c0_15, %c0_16] : memref<2x32xf32, #tpu.memory_space<vmem>>, vector<2x32xf32>
    %30 = arith.mulf %29, %26 : vector<2x32xf32>
    %31 = arith.mulf %25, %27 : vector<2x32xf32>
    %32 = arith.addf %30, %31 : vector<2x32xf32>
    %33 = math.tanh %32 : vector<2x32xf32>
    %34 = arith.mulf %28, %33 : vector<2x32xf32>
    %c0_17 = arith.constant 0 : index
    %c0_18 = arith.constant 0 : index
    %35 = vector.load %arg9[%c0_17, %c0_18] : memref<2x32xf32, #tpu.memory_space<vmem>>, vector<2x32xf32>
    tpu.vector_store %arg9[%c0_17, %c0_18], %32 {strides = array<i32>} : memref<2x32xf32, #tpu.memory_space<vmem>>, vector<2x32xf32>,
    %c0_19 = arith.constant 0 : index
    %c0_20 = arith.constant 0 : index
    %36 = vector.load %arg8[%c0_19, %c0_20] : memref<2x32xf32, #tpu.memory_space<vmem>>, vector<2x32xf32>
    tpu.vector_store %arg8[%c0_19, %c0_20], %34 {strides = array<i32>} : memref<2x32xf32, #tpu.memory_space<vmem>>, vector<2x32xf32>,
    %37 = arith.index_cast %c0_i32_1 : i32 to index
    %c0_21 = arith.constant 0 : index
    %c0_22 = arith.constant 0 : index
    %38 = vector.load %arg7[%37, %c0_21, %c0_22] : memref<8x2x32xf32, #tpu.memory_space<vmem>>, vector<1x2x32xf32>
    %39 = vector.shape_cast %38 : vector<1x2x32xf32> to vector<2x32xf32>
    %40 = vector.shape_cast %34 : vector<2x32xf32> to vector<1x2x32xf32>
    tpu.vector_store %arg7[%37, %c0_21, %c0_22], %40 {strides = array<i32>} : memref<8x2x32xf32, #tpu.memory_space<vmem>>, vector<1x2x32xf32>,
    %c1_i32 = arith.constant 1 : i32
    %41 = arith.index_cast %c1_i32 : i32 to index
    %c0_23 = arith.constant 0 : index
    %c0_24 = arith.constant 0 : index
    %42 = vector.load %arg1[%41, %c0_23, %c0_24] : memref<8x2x16xf32, #tpu.memory_space<vmem>>, vector<1x2x16xf32>
    %43 = vector.shape_cast %42 : vector<1x2x16xf32> to vector<2x16xf32>
    %44 = arith.truncf %43 : vector<2x16xf32> to vector<2x16xbf16>
    %c0_25 = arith.constant 0 : index
    %c0_26 = arith.constant 0 : index
    %45 = vector.load %arg8[%c0_25, %c0_26] : memref<2x32xf32, #tpu.memory_space<vmem>>, vector<2x32xf32>
    %46 = arith.truncf %45 : vector<2x32xf32> to vector<2x32xbf16>
    %c0_27 = arith.constant 0 : index
    %c0_28 = arith.constant 0 : index
    %47 = vector.load %arg2[%c0_27, %c0_28] : memref<16x128xbf16, #tpu.memory_space<vmem>>, vector<16x128xbf16>
    %cst_29 = arith.constant dense<0.000000e+00> : vector<2x128xf32>
    %48 = tpu.matmul %44, %47, %cst_29 {dimension_numbers = #tpu.dot_dimension_numbers<[1], [0], [0], [1], [0, 0, 1, 1], [], []>} : vector<2x16xbf16>, vector<16x128xbf16>, vector<2x128xf32> -> vector<2x128xf32>
    %c0_30 = arith.constant 0 : index
    %c0_31 = arith.constant 0 : index
    %49 = vector.load %arg3[%c0_30, %c0_31] : memref<32x128xbf16, #tpu.memory_space<vmem>>, vector<32x128xbf16>
    %cst_32 = arith.constant dense<0.000000e+00> : vector<2x128xf32>
    %50 = tpu.matmul %46, %49, %cst_32 {dimension_numbers = #tpu.dot_dimension_numbers<[1], [0], [0], [1], [0, 0, 1, 1], [], []>} : vector<2x32xbf16>, vector<32x128xbf16>, vector<2x128xf32> -> vector<2x128xf32>
    %51 = arith.addf %48, %50 : vector<2x128xf32>
    %c0_33 = arith.constant 0 : index
    %c0_34 = arith.constant 0 : index
    %52 = vector.load %arg4[%c0_33, %c0_34] : memref<1x128xf32, #tpu.memory_space<vmem>>, vector<1x128xf32>
    %53 = vector.broadcast %52 : vector<1x128xf32> to vector<2x128xf32>
    %54 = arith.addf %51, %53 : vector<2x128xf32>
    %cst_35 = arith.constant 5.000000e-01 : f32
    %55 = vector.broadcast %cst_35 : f32 to vector<2x128xf32>
    %56 = arith.mulf %55, %54 : vector<2x128xf32>
    %57 = math.tanh %56 : vector<2x128xf32>
    %cst_36 = arith.constant 1.000000e+00 : f32
    %58 = vector.broadcast %cst_36 : f32 to vector<2x128xf32>
    %59 = arith.addf %57, %58 : vector<2x128xf32>
    %cst_37 = arith.constant 5.000000e-01 : f32
    %60 = vector.broadcast %cst_37 : f32 to vector<2x128xf32>
    %61 = arith.mulf %60, %59 : vector<2x128xf32>
    %62 = math.tanh %54 : vector<2x128xf32>
    %63 = vector.extract_strided_slice %61 {offsets = [0, 0], sizes = [2, 32], strides = [1, 1]} : vector<2x128xf32> to vector<2x32xf32>
    %64 = vector.extract_strided_slice %61 {offsets = [0, 32], sizes = [2, 32], strides = [1, 1]} : vector<2x128xf32> to vector<2x32xf32>
    %65 = vector.extract_strided_slice %62 {offsets = [0, 64], sizes = [2, 32], strides = [1, 1]} : vector<2x128xf32> to vector<2x32xf32>
    %66 = vector.extract_strided_slice %61 {offsets = [0, 96], sizes = [2, 32], strides = [1, 1]} : vector<2x128xf32> to vector<2x32xf32>
    %c0_38 = arith.constant 0 : index
    %c0_39 = arith.constant 0 : index
    %67 = vector.load %arg9[%c0_38, %c0_39] : memref<2x32xf32, #tpu.memory_space<vmem>>, vector<2x32xf32>
    %68 = arith.mulf %67, %64 : vector<2x32xf32>
    %69 = arith.mulf %63, %65 : vector<2x32xf32>
    %70 = arith.addf %68, %69 : vector<2x32xf32>
    %71 = math.tanh %70 : vector<2x32xf32>
    %72 = arith.mulf %66, %71 : vector<2x32xf32>
    %c0_40 = arith.constant 0 : index
    %c0_41 = arith.constant 0 : index
    %73 = vector.load %arg9[%c0_40, %c0_41] : memref<2x32xf32, #tpu.memory_space<vmem>>, vector<2x32xf32>
    tpu.vector_store %arg9[%c0_40, %c0_41], %70 {strides = array<i32>} : memref<2x32xf32, #tpu.memory_space<vmem>>, vector<2x32xf32>,
    %c0_42 = arith.constant 0 : index
    %c0_43 = arith.constant 0 : index
    %74 = vector.load %arg8[%c0_42, %c0_43] : memref<2x32xf32, #tpu.memory_space<vmem>>, vector<2x32xf32>
    tpu.vector_store %arg8[%c0_42, %c0_43], %72 {strides = array<i32>} : memref<2x32xf32, #tpu.memory_space<vmem>>, vector<2x32xf32>,
    %75 = arith.index_cast %c1_i32 : i32 to index
    %c0_44 = arith.constant 0 : index
    %c0_45 = arith.constant 0 : index
    %76 = vector.load %arg7[%75, %c0_44, %c0_45] : memref<8x2x32xf32, #tpu.memory_space<vmem>>, vector<1x2x32xf32>
    %77 = vector.shape_cast %76 : vector<1x2x32xf32> to vector<2x32xf32>
    %78 = vector.shape_cast %72 : vector<2x32xf32> to vector<1x2x32xf32>
    tpu.vector_store %arg7[%75, %c0_44, %c0_45], %78 {strides = array<i32>} : memref<8x2x32xf32, #tpu.memory_space<vmem>>, vector<1x2x32xf32>,
    %c2_i32 = arith.constant 2 : i32
    %79 = arith.index_cast %c2_i32 : i32 to index
    %c0_46 = arith.constant 0 : index
    %c0_47 = arith.constant 0 : index
    %80 = vector.load %arg1[%79, %c0_46, %c0_47] : memref<8x2x16xf32, #tpu.memory_space<vmem>>, vector<1x2x16xf32>
    %81 = vector.shape_cast %80 : vector<1x2x16xf32> to vector<2x16xf32>
    %82 = arith.truncf %81 : vector<2x16xf32> to vector<2x16xbf16>
    %c0_48 = arith.constant 0 : index
    %c0_49 = arith.constant 0 : index
    %83 = vector.load %arg8[%c0_48, %c0_49] : memref<2x32xf32, #tpu.memory_space<vmem>>, vector<2x32xf32>
    %84 = arith.truncf %83 : vector<2x32xf32> to vector<2x32xbf16>
    %c0_50 = arith.constant 0 : index
    %c0_51 = arith.constant 0 : index
    %85 = vector.load %arg2[%c0_50, %c0_51] : memref<16x128xbf16, #tpu.memory_space<vmem>>, vector<16x128xbf16>
    %cst_52 = arith.constant dense<0.000000e+00> : vector<2x128xf32>
    %86 = tpu.matmul %82, %85, %cst_52 {dimension_numbers = #tpu.dot_dimension_numbers<[1], [0], [0], [1], [0, 0, 1, 1], [], []>} : vector<2x16xbf16>, vector<16x128xbf16>, vector<2x128xf32> -> vector<2x128xf32>
    %c0_53 = arith.constant 0 : index
    %c0_54 = arith.constant 0 : index
    %87 = vector.load %arg3[%c0_53, %c0_54] : memref<32x128xbf16, #tpu.memory_space<vmem>>, vector<32x128xbf16>
    %cst_55 = arith.constant dense<0.000000e+00> : vector<2x128xf32>
    %88 = tpu.matmul %84, %87, %cst_55 {dimension_numbers = #tpu.dot_dimension_numbers<[1], [0], [0], [1], [0, 0, 1, 1], [], []>} : vector<2x32xbf16>, vector<32x128xbf16>, vector<2x128xf32> -> vector<2x128xf32>
    %89 = arith.addf %86, %88 : vector<2x128xf32>
    %c0_56 = arith.constant 0 : index
    %c0_57 = arith.constant 0 : index
    %90 = vector.load %arg4[%c0_56, %c0_57] : memref<1x128xf32, #tpu.memory_space<vmem>>, vector<1x128xf32>
    %91 = vector.broadcast %90 : vector<1x128xf32> to vector<2x128xf32>
    %92 = arith.addf %89, %91 : vector<2x128xf32>
    %cst_58 = arith.constant 5.000000e-01 : f32
    %93 = vector.broadcast %cst_58 : f32 to vector<2x128xf32>
    %94 = arith.mulf %93, %92 : vector<2x128xf32>
    %95 = math.tanh %94 : vector<2x128xf32>
    %cst_59 = arith.constant 1.000000e+00 : f32
    %96 = vector.broadcast %cst_59 : f32 to vector<2x128xf32>
    %97 = arith.addf %95, %96 : vector<2x128xf32>
    %cst_60 = arith.constant 5.000000e-01 : f32
    %98 = vector.broadcast %cst_60 : f32 to vector<2x128xf32>
    %99 = arith.mulf %98, %97 : vector<2x128xf32>
    %100 = math.tanh %92 : vector<2x128xf32>
    %101 = vector.extract_strided_slice %99 {offsets = [0, 0], sizes = [2, 32], strides = [1, 1]} : vector<2x128xf32> to vector<2x32xf32>
    %102 = vector.extract_strided_slice %99 {offsets = [0, 32], sizes = [2, 32], strides = [1, 1]} : vector<2x128xf32> to vector<2x32xf32>
    %103 = vector.extract_strided_slice %100 {offsets = [0, 64], sizes = [2, 32], strides = [1, 1]} : vector<2x128xf32> to vector<2x32xf32>
    %104 = vector.extract_strided_slice %99 {offsets = [0, 96], sizes = [2, 32], strides = [1, 1]} : vector<2x128xf32> to vector<2x32xf32>
    %c0_61 = arith.constant 0 : index
    %c0_62 = arith.constant 0 : index
    %105 = vector.load %arg9[%c0_61, %c0_62] : memref<2x32xf32, #tpu.memory_space<vmem>>, vector<2x32xf32>
    %106 = arith.mulf %105, %102 : vector<2x32xf32>
    %107 = arith.mulf %101, %103 : vector<2x32xf32>
    %108 = arith.addf %106, %107 : vector<2x32xf32>
    %109 = math.tanh %108 : vector<2x32xf32>
    %110 = arith.mulf %104, %109 : vector<2x32xf32>
    %c0_63 = arith.constant 0 : index
    %c0_64 = arith.constant 0 : index
    %111 = vector.load %arg9[%c0_63, %c0_64] : memref<2x32xf32, #tpu.memory_space<vmem>>, vector<2x32xf32>
    tpu.vector_store %arg9[%c0_63, %c0_64], %108 {strides = array<i32>} : memref<2x32xf32, #tpu.memory_space<vmem>>, vector<2x32xf32>,
    %c0_65 = arith.constant 0 : index
    %c0_66 = arith.constant 0 : index
    %112 = vector.load %arg8[%c0_65, %c0_66] : memref<2x32xf32, #tpu.memory_space<vmem>>, vector<2x32xf32>
    tpu.vector_store %arg8[%c0_65, %c0_66], %110 {strides = array<i32>} : memref<2x32xf32, #tpu.memory_space<vmem>>, vector<2x32xf32>,
    %113 = arith.index_cast %c2_i32 : i32 to index
    %c0_67 = arith.constant 0 : index
    %c0_68 = arith.constant 0 : index
    %114 = vector.load %arg7[%113, %c0_67, %c0_68] : memref<8x2x32xf32, #tpu.memory_space<vmem>>, vector<1x2x32xf32>
    %115 = vector.shape_cast %114 : vector<1x2x32xf32> to vector<2x32xf32>
    %116 = vector.shape_cast %110 : vector<2x32xf32> to vector<1x2x32xf32>
    tpu.vector_store %arg7[%113, %c0_67, %c0_68], %116 {strides = array<i32>} : memref<8x2x32xf32, #tpu.memory_space<vmem>>, vector<1x2x32xf32>,
    %c3_i32 = arith.constant 3 : i32
    %117 = arith.index_cast %c3_i32 : i32 to index
    %c0_69 = arith.constant 0 : index
    %c0_70 = arith.constant 0 : index
    %118 = vector.load %arg1[%117, %c0_69, %c0_70] : memref<8x2x16xf32, #tpu.memory_space<vmem>>, vector<1x2x16xf32>
    %119 = vector.shape_cast %118 : vector<1x2x16xf32> to vector<2x16xf32>
    %120 = arith.truncf %119 : vector<2x16xf32> to vector<2x16xbf16>
    %c0_71 = arith.constant 0 : index
    %c0_72 = arith.constant 0 : index
    %121 = vector.load %arg8[%c0_71, %c0_72] : memref<2x32xf32, #tpu.memory_space<vmem>>, vector<2x32xf32>
    %122 = arith.truncf %121 : vector<2x32xf32> to vector<2x32xbf16>
    %c0_73 = arith.constant 0 : index
    %c0_74 = arith.constant 0 : index
    %123 = vector.load %arg2[%c0_73, %c0_74] : memref<16x128xbf16, #tpu.memory_space<vmem>>, vector<16x128xbf16>
    %cst_75 = arith.constant dense<0.000000e+00> : vector<2x128xf32>
    %124 = tpu.matmul %120, %123, %cst_75 {dimension_numbers = #tpu.dot_dimension_numbers<[1], [0], [0], [1], [0, 0, 1, 1], [], []>} : vector<2x16xbf16>, vector<16x128xbf16>, vector<2x128xf32> -> vector<2x128xf32>
    %c0_76 = arith.constant 0 : index
    %c0_77 = arith.constant 0 : index
    %125 = vector.load %arg3[%c0_76, %c0_77] : memref<32x128xbf16, #tpu.memory_space<vmem>>, vector<32x128xbf16>
    %cst_78 = arith.constant dense<0.000000e+00> : vector<2x128xf32>
    %126 = tpu.matmul %122, %125, %cst_78 {dimension_numbers = #tpu.dot_dimension_numbers<[1], [0], [0], [1], [0, 0, 1, 1], [], []>} : vector<2x32xbf16>, vector<32x128xbf16>, vector<2x128xf32> -> vector<2x128xf32>
    %127 = arith.addf %124, %126 : vector<2x128xf32>
    %c0_79 = arith.constant 0 : index
    %c0_80 = arith.constant 0 : index
    %128 = vector.load %arg4[%c0_79, %c0_80] : memref<1x128xf32, #tpu.memory_space<vmem>>, vector<1x128xf32>
    %129 = vector.broadcast %128 : vector<1x128xf32> to vector<2x128xf32>
    %130 = arith.addf %127, %129 : vector<2x128xf32>
    %cst_81 = arith.constant 5.000000e-01 : f32
    %131 = vector.broadcast %cst_81 : f32 to vector<2x128xf32>
    %132 = arith.mulf %131, %130 : vector<2x128xf32>
    %133 = math.tanh %132 : vector<2x128xf32>
    %cst_82 = arith.constant 1.000000e+00 : f32
    %134 = vector.broadcast %cst_82 : f32 to vector<2x128xf32>
    %135 = arith.addf %133, %134 : vector<2x128xf32>
    %cst_83 = arith.constant 5.000000e-01 : f32
    %136 = vector.broadcast %cst_83 : f32 to vector<2x128xf32>
    %137 = arith.mulf %136, %135 : vector<2x128xf32>
    %138 = math.tanh %130 : vector<2x128xf32>
    %139 = vector.extract_strided_slice %137 {offsets = [0, 0], sizes = [2, 32], strides = [1, 1]} : vector<2x128xf32> to vector<2x32xf32>
    %140 = vector.extract_strided_slice %137 {offsets = [0, 32], sizes = [2, 32], strides = [1, 1]} : vector<2x128xf32> to vector<2x32xf32>
    %141 = vector.extract_strided_slice %138 {offsets = [0, 64], sizes = [2, 32], strides = [1, 1]} : vector<2x128xf32> to vector<2x32xf32>
    %142 = vector.extract_strided_slice %137 {offsets = [0, 96], sizes = [2, 32], strides = [1, 1]} : vector<2x128xf32> to vector<2x32xf32>
    %c0_84 = arith.constant 0 : index
    %c0_85 = arith.constant 0 : index
    %143 = vector.load %arg9[%c0_84, %c0_85] : memref<2x32xf32, #tpu.memory_space<vmem>>, vector<2x32xf32>
    %144 = arith.mulf %143, %140 : vector<2x32xf32>
    %145 = arith.mulf %139, %141 : vector<2x32xf32>
    %146 = arith.addf %144, %145 : vector<2x32xf32>
    %147 = math.tanh %146 : vector<2x32xf32>
    %148 = arith.mulf %142, %147 : vector<2x32xf32>
    %c0_86 = arith.constant 0 : index
    %c0_87 = arith.constant 0 : index
    %149 = vector.load %arg9[%c0_86, %c0_87] : memref<2x32xf32, #tpu.memory_space<vmem>>, vector<2x32xf32>
    tpu.vector_store %arg9[%c0_86, %c0_87], %146 {strides = array<i32>} : memref<2x32xf32, #tpu.memory_space<vmem>>, vector<2x32xf32>,
    %c0_88 = arith.constant 0 : index
    %c0_89 = arith.constant 0 : index
    %150 = vector.load %arg8[%c0_88, %c0_89] : memref<2x32xf32, #tpu.memory_space<vmem>>, vector<2x32xf32>
    tpu.vector_store %arg8[%c0_88, %c0_89], %148 {strides = array<i32>} : memref<2x32xf32, #tpu.memory_space<vmem>>, vector<2x32xf32>,
    %151 = arith.index_cast %c3_i32 : i32 to index
    %c0_90 = arith.constant 0 : index
    %c0_91 = arith.constant 0 : index
    %152 = vector.load %arg7[%151, %c0_90, %c0_91] : memref<8x2x32xf32, #tpu.memory_space<vmem>>, vector<1x2x32xf32>
    %153 = vector.shape_cast %152 : vector<1x2x32xf32> to vector<2x32xf32>
    %154 = vector.shape_cast %148 : vector<2x32xf32> to vector<1x2x32xf32>
    tpu.vector_store %arg7[%151, %c0_90, %c0_91], %154 {strides = array<i32>} : memref<8x2x32xf32, #tpu.memory_space<vmem>>, vector<1x2x32xf32>,
    %c4_i32 = arith.constant 4 : i32
    %155 = arith.index_cast %c4_i32 : i32 to index
    %c0_92 = arith.constant 0 : index
    %c0_93 = arith.constant 0 : index
    %156 = vector.load %arg1[%155, %c0_92, %c0_93] : memref<8x2x16xf32, #tpu.memory_space<vmem>>, vector<1x2x16xf32>
    %157 = vector.shape_cast %156 : vector<1x2x16xf32> to vector<2x16xf32>
    %158 = arith.truncf %157 : vector<2x16xf32> to vector<2x16xbf16>
    %c0_94 = arith.constant 0 : index
    %c0_95 = arith.constant 0 : index
    %159 = vector.load %arg8[%c0_94, %c0_95] : memref<2x32xf32, #tpu.memory_space<vmem>>, vector<2x32xf32>
    %160 = arith.truncf %159 : vector<2x32xf32> to vector<2x32xbf16>
    %c0_96 = arith.constant 0 : index
    %c0_97 = arith.constant 0 : index
    %161 = vector.load %arg2[%c0_96, %c0_97] : memref<16x128xbf16, #tpu.memory_space<vmem>>, vector<16x128xbf16>
    %cst_98 = arith.constant dense<0.000000e+00> : vector<2x128xf32>
    %162 = tpu.matmul %158, %161, %cst_98 {dimension_numbers = #tpu.dot_dimension_numbers<[1], [0], [0], [1], [0, 0, 1, 1], [], []>} : vector<2x16xbf16>, vector<16x128xbf16>, vector<2x128xf32> -> vector<2x128xf32>
    %c0_99 = arith.constant 0 : index
    %c0_100 = arith.constant 0 : index
    %163 = vector.load %arg3[%c0_99, %c0_100] : memref<32x128xbf16, #tpu.memory_space<vmem>>, vector<32x128xbf16>
    %cst_101 = arith.constant dense<0.000000e+00> : vector<2x128xf32>
    %164 = tpu.matmul %160, %163, %cst_101 {dimension_numbers = #tpu.dot_dimension_numbers<[1], [0], [0], [1], [0, 0, 1, 1], [], []>} : vector<2x32xbf16>, vector<32x128xbf16>, vector<2x128xf32> -> vector<2x128xf32>
    %165 = arith.addf %162, %164 : vector<2x128xf32>
    %c0_102 = arith.constant 0 : index
    %c0_103 = arith.constant 0 : index
    %166 = vector.load %arg4[%c0_102, %c0_103] : memref<1x128xf32, #tpu.memory_space<vmem>>, vector<1x128xf32>
    %167 = vector.broadcast %166 : vector<1x128xf32> to vector<2x128xf32>
    %168 = arith.addf %165, %167 : vector<2x128xf32>
    %cst_104 = arith.constant 5.000000e-01 : f32
    %169 = vector.broadcast %cst_104 : f32 to vector<2x128xf32>
    %170 = arith.mulf %169, %168 : vector<2x128xf32>
    %171 = math.tanh %170 : vector<2x128xf32>
    %cst_105 = arith.constant 1.000000e+00 : f32
    %172 = vector.broadcast %cst_105 : f32 to vector<2x128xf32>
    %173 = arith.addf %171, %172 : vector<2x128xf32>
    %cst_106 = arith.constant 5.000000e-01 : f32
    %174 = vector.broadcast %cst_106 : f32 to vector<2x128xf32>
    %175 = arith.mulf %174, %173 : vector<2x128xf32>
    %176 = math.tanh %168 : vector<2x128xf32>
    %177 = vector.extract_strided_slice %175 {offsets = [0, 0], sizes = [2, 32], strides = [1, 1]} : vector<2x128xf32> to vector<2x32xf32>
    %178 = vector.extract_strided_slice %175 {offsets = [0, 32], sizes = [2, 32], strides = [1, 1]} : vector<2x128xf32> to vector<2x32xf32>
    %179 = vector.extract_strided_slice %176 {offsets = [0, 64], sizes = [2, 32], strides = [1, 1]} : vector<2x128xf32> to vector<2x32xf32>
    %180 = vector.extract_strided_slice %175 {offsets = [0, 96], sizes = [2, 32], strides = [1, 1]} : vector<2x128xf32> to vector<2x32xf32>
    %c0_107 = arith.constant 0 : index
    %c0_108 = arith.constant 0 : index
    %181 = vector.load %arg9[%c0_107, %c0_108] : memref<2x32xf32, #tpu.memory_space<vmem>>, vector<2x32xf32>
    %182 = arith.mulf %181, %178 : vector<2x32xf32>
    %183 = arith.mulf %177, %179 : vector<2x32xf32>
    %184 = arith.addf %182, %183 : vector<2x32xf32>
    %185 = math.tanh %184 : vector<2x32xf32>
    %186 = arith.mulf %180, %185 : vector<2x32xf32>
    %c0_109 = arith.constant 0 : index
    %c0_110 = arith.constant 0 : index
    %187 = vector.load %arg9[%c0_109, %c0_110] : memref<2x32xf32, #tpu.memory_space<vmem>>, vector<2x32xf32>
    tpu.vector_store %arg9[%c0_109, %c0_110], %184 {strides = array<i32>} : memref<2x32xf32, #tpu.memory_space<vmem>>, vector<2x32xf32>,
    %c0_111 = arith.constant 0 : index
    %c0_112 = arith.constant 0 : index
    %188 = vector.load %arg8[%c0_111, %c0_112] : memref<2x32xf32, #tpu.memory_space<vmem>>, vector<2x32xf32>
    tpu.vector_store %arg8[%c0_111, %c0_112], %186 {strides = array<i32>} : memref<2x32xf32, #tpu.memory_space<vmem>>, vector<2x32xf32>,
    %189 = arith.index_cast %c4_i32 : i32 to index
    %c0_113 = arith.constant 0 : index
    %c0_114 = arith.constant 0 : index
    %190 = vector.load %arg7[%189, %c0_113, %c0_114] : memref<8x2x32xf32, #tpu.memory_space<vmem>>, vector<1x2x32xf32>
    %191 = vector.shape_cast %190 : vector<1x2x32xf32> to vector<2x32xf32>
    %192 = vector.shape_cast %186 : vector<2x32xf32> to vector<1x2x32xf32>
    tpu.vector_store %arg7[%189, %c0_113, %c0_114], %192 {strides = array<i32>} : memref<8x2x32xf32, #tpu.memory_space<vmem>>, vector<1x2x32xf32>,
    %c5_i32 = arith.constant 5 : i32
    %193 = arith.index_cast %c5_i32 : i32 to index
    %c0_115 = arith.constant 0 : index
    %c0_116 = arith.constant 0 : index
    %194 = vector.load %arg1[%193, %c0_115, %c0_116] : memref<8x2x16xf32, #tpu.memory_space<vmem>>, vector<1x2x16xf32>
    %195 = vector.shape_cast %194 : vector<1x2x16xf32> to vector<2x16xf32>
    %196 = arith.truncf %195 : vector<2x16xf32> to vector<2x16xbf16>
    %c0_117 = arith.constant 0 : index
    %c0_118 = arith.constant 0 : index
    %197 = vector.load %arg8[%c0_117, %c0_118] : memref<2x32xf32, #tpu.memory_space<vmem>>, vector<2x32xf32>
    %198 = arith.truncf %197 : vector<2x32xf32> to vector<2x32xbf16>
    %c0_119 = arith.constant 0 : index
    %c0_120 = arith.constant 0 : index
    %199 = vector.load %arg2[%c0_119, %c0_120] : memref<16x128xbf16, #tpu.memory_space<vmem>>, vector<16x128xbf16>
    %cst_121 = arith.constant dense<0.000000e+00> : vector<2x128xf32>
    %200 = tpu.matmul %196, %199, %cst_121 {dimension_numbers = #tpu.dot_dimension_numbers<[1], [0], [0], [1], [0, 0, 1, 1], [], []>} : vector<2x16xbf16>, vector<16x128xbf16>, vector<2x128xf32> -> vector<2x128xf32>
    %c0_122 = arith.constant 0 : index
    %c0_123 = arith.constant 0 : index
    %201 = vector.load %arg3[%c0_122, %c0_123] : memref<32x128xbf16, #tpu.memory_space<vmem>>, vector<32x128xbf16>
    %cst_124 = arith.constant dense<0.000000e+00> : vector<2x128xf32>
    %202 = tpu.matmul %198, %201, %cst_124 {dimension_numbers = #tpu.dot_dimension_numbers<[1], [0], [0], [1], [0, 0, 1, 1], [], []>} : vector<2x32xbf16>, vector<32x128xbf16>, vector<2x128xf32> -> vector<2x128xf32>
    %203 = arith.addf %200, %202 : vector<2x128xf32>
    %c0_125 = arith.constant 0 : index
    %c0_126 = arith.constant 0 : index
    %204 = vector.load %arg4[%c0_125, %c0_126] : memref<1x128xf32, #tpu.memory_space<vmem>>, vector<1x128xf32>
    %205 = vector.broadcast %204 : vector<1x128xf32> to vector<2x128xf32>
    %206 = arith.addf %203, %205 : vector<2x128xf32>
    %cst_127 = arith.constant 5.000000e-01 : f32
    %207 = vector.broadcast %cst_127 : f32 to vector<2x128xf32>
    %208 = arith.mulf %207, %206 : vector<2x128xf32>
    %209 = math.tanh %208 : vector<2x128xf32>
    %cst_128 = arith.constant 1.000000e+00 : f32
    %210 = vector.broadcast %cst_128 : f32 to vector<2x128xf32>
    %211 = arith.addf %209, %210 : vector<2x128xf32>
    %cst_129 = arith.constant 5.000000e-01 : f32
    %212 = vector.broadcast %cst_129 : f32 to vector<2x128xf32>
    %213 = arith.mulf %212, %211 : vector<2x128xf32>
    %214 = math.tanh %206 : vector<2x128xf32>
    %215 = vector.extract_strided_slice %213 {offsets = [0, 0], sizes = [2, 32], strides = [1, 1]} : vector<2x128xf32> to vector<2x32xf32>
    %216 = vector.extract_strided_slice %213 {offsets = [0, 32], sizes = [2, 32], strides = [1, 1]} : vector<2x128xf32> to vector<2x32xf32>
    %217 = vector.extract_strided_slice %214 {offsets = [0, 64], sizes = [2, 32], strides = [1, 1]} : vector<2x128xf32> to vector<2x32xf32>
    %218 = vector.extract_strided_slice %213 {offsets = [0, 96], sizes = [2, 32], strides = [1, 1]} : vector<2x128xf32> to vector<2x32xf32>
    %c0_130 = arith.constant 0 : index
    %c0_131 = arith.constant 0 : index
    %219 = vector.load %arg9[%c0_130, %c0_131] : memref<2x32xf32, #tpu.memory_space<vmem>>, vector<2x32xf32>
    %220 = arith.mulf %219, %216 : vector<2x32xf32>
    %221 = arith.mulf %215, %217 : vector<2x32xf32>
    %222 = arith.addf %220, %221 : vector<2x32xf32>
    %223 = math.tanh %222 : vector<2x32xf32>
    %224 = arith.mulf %218, %223 : vector<2x32xf32>
    %c0_132 = arith.constant 0 : index
    %c0_133 = arith.constant 0 : index
    %225 = vector.load %arg9[%c0_132, %c0_133] : memref<2x32xf32, #tpu.memory_space<vmem>>, vector<2x32xf32>
    tpu.vector_store %arg9[%c0_132, %c0_133], %222 {strides = array<i32>} : memref<2x32xf32, #tpu.memory_space<vmem>>, vector<2x32xf32>,
    %c0_134 = arith.constant 0 : index
    %c0_135 = arith.constant 0 : index
    %226 = vector.load %arg8[%c0_134, %c0_135] : memref<2x32xf32, #tpu.memory_space<vmem>>, vector<2x32xf32>
    tpu.vector_store %arg8[%c0_134, %c0_135], %224 {strides = array<i32>} : memref<2x32xf32, #tpu.memory_space<vmem>>, vector<2x32xf32>,
    %227 = arith.index_cast %c5_i32 : i32 to index
    %c0_136 = arith.constant 0 : index
    %c0_137 = arith.constant 0 : index
    %228 = vector.load %arg7[%227, %c0_136, %c0_137] : memref<8x2x32xf32, #tpu.memory_space<vmem>>, vector<1x2x32xf32>
    %229 = vector.shape_cast %228 : vector<1x2x32xf32> to vector<2x32xf32>
    %230 = vector.shape_cast %224 : vector<2x32xf32> to vector<1x2x32xf32>
    tpu.vector_store %arg7[%227, %c0_136, %c0_137], %230 {strides = array<i32>} : memref<8x2x32xf32, #tpu.memory_space<vmem>>, vector<1x2x32xf32>,
    %c6_i32 = arith.constant 6 : i32
    %231 = arith.index_cast %c6_i32 : i32 to index
    %c0_138 = arith.constant 0 : index
    %c0_139 = arith.constant 0 : index
    %232 = vector.load %arg1[%231, %c0_138, %c0_139] : memref<8x2x16xf32, #tpu.memory_space<vmem>>, vector<1x2x16xf32>
    %233 = vector.shape_cast %232 : vector<1x2x16xf32> to vector<2x16xf32>
    %234 = arith.truncf %233 : vector<2x16xf32> to vector<2x16xbf16>
    %c0_140 = arith.constant 0 : index
    %c0_141 = arith.constant 0 : index
    %235 = vector.load %arg8[%c0_140, %c0_141] : memref<2x32xf32, #tpu.memory_space<vmem>>, vector<2x32xf32>
    %236 = arith.truncf %235 : vector<2x32xf32> to vector<2x32xbf16>
    %c0_142 = arith.constant 0 : index
    %c0_143 = arith.constant 0 : index
    %237 = vector.load %arg2[%c0_142, %c0_143] : memref<16x128xbf16, #tpu.memory_space<vmem>>, vector<16x128xbf16>
    %cst_144 = arith.constant dense<0.000000e+00> : vector<2x128xf32>
    %238 = tpu.matmul %234, %237, %cst_144 {dimension_numbers = #tpu.dot_dimension_numbers<[1], [0], [0], [1], [0, 0, 1, 1], [], []>} : vector<2x16xbf16>, vector<16x128xbf16>, vector<2x128xf32> -> vector<2x128xf32>
    %c0_145 = arith.constant 0 : index
    %c0_146 = arith.constant 0 : index
    %239 = vector.load %arg3[%c0_145, %c0_146] : memref<32x128xbf16, #tpu.memory_space<vmem>>, vector<32x128xbf16>
    %cst_147 = arith.constant dense<0.000000e+00> : vector<2x128xf32>
    %240 = tpu.matmul %236, %239, %cst_147 {dimension_numbers = #tpu.dot_dimension_numbers<[1], [0], [0], [1], [0, 0, 1, 1], [], []>} : vector<2x32xbf16>, vector<32x128xbf16>, vector<2x128xf32> -> vector<2x128xf32>
    %241 = arith.addf %238, %240 : vector<2x128xf32>
    %c0_148 = arith.constant 0 : index
    %c0_149 = arith.constant 0 : index
    %242 = vector.load %arg4[%c0_148, %c0_149] : memref<1x128xf32, #tpu.memory_space<vmem>>, vector<1x128xf32>
    %243 = vector.broadcast %242 : vector<1x128xf32> to vector<2x128xf32>
    %244 = arith.addf %241, %243 : vector<2x128xf32>
    %cst_150 = arith.constant 5.000000e-01 : f32
    %245 = vector.broadcast %cst_150 : f32 to vector<2x128xf32>
    %246 = arith.mulf %245, %244 : vector<2x128xf32>
    %247 = math.tanh %246 : vector<2x128xf32>
    %cst_151 = arith.constant 1.000000e+00 : f32
    %248 = vector.broadcast %cst_151 : f32 to vector<2x128xf32>
    %249 = arith.addf %247, %248 : vector<2x128xf32>
    %cst_152 = arith.constant 5.000000e-01 : f32
    %250 = vector.broadcast %cst_152 : f32 to vector<2x128xf32>
    %251 = arith.mulf %250, %249 : vector<2x128xf32>
    %252 = math.tanh %244 : vector<2x128xf32>
    %253 = vector.extract_strided_slice %251 {offsets = [0, 0], sizes = [2, 32], strides = [1, 1]} : vector<2x128xf32> to vector<2x32xf32>
    %254 = vector.extract_strided_slice %251 {offsets = [0, 32], sizes = [2, 32], strides = [1, 1]} : vector<2x128xf32> to vector<2x32xf32>
    %255 = vector.extract_strided_slice %252 {offsets = [0, 64], sizes = [2, 32], strides = [1, 1]} : vector<2x128xf32> to vector<2x32xf32>
    %256 = vector.extract_strided_slice %251 {offsets = [0, 96], sizes = [2, 32], strides = [1, 1]} : vector<2x128xf32> to vector<2x32xf32>
    %c0_153 = arith.constant 0 : index
    %c0_154 = arith.constant 0 : index
    %257 = vector.load %arg9[%c0_153, %c0_154] : memref<2x32xf32, #tpu.memory_space<vmem>>, vector<2x32xf32>
    %258 = arith.mulf %257, %254 : vector<2x32xf32>
    %259 = arith.mulf %253, %255 : vector<2x32xf32>
    %260 = arith.addf %258, %259 : vector<2x32xf32>
    %261 = math.tanh %260 : vector<2x32xf32>
    %262 = arith.mulf %256, %261 : vector<2x32xf32>
    %c0_155 = arith.constant 0 : index
    %c0_156 = arith.constant 0 : index
    %263 = vector.load %arg9[%c0_155, %c0_156] : memref<2x32xf32, #tpu.memory_space<vmem>>, vector<2x32xf32>
    tpu.vector_store %arg9[%c0_155, %c0_156], %260 {strides = array<i32>} : memref<2x32xf32, #tpu.memory_space<vmem>>, vector<2x32xf32>,
    %c0_157 = arith.constant 0 : index
    %c0_158 = arith.constant 0 : index
    %264 = vector.load %arg8[%c0_157, %c0_158] : memref<2x32xf32, #tpu.memory_space<vmem>>, vector<2x32xf32>
    tpu.vector_store %arg8[%c0_157, %c0_158], %262 {strides = array<i32>} : memref<2x32xf32, #tpu.memory_space<vmem>>, vector<2x32xf32>,
    %265 = arith.index_cast %c6_i32 : i32 to index
    %c0_159 = arith.constant 0 : index
    %c0_160 = arith.constant 0 : index
    %266 = vector.load %arg7[%265, %c0_159, %c0_160] : memref<8x2x32xf32, #tpu.memory_space<vmem>>, vector<1x2x32xf32>
    %267 = vector.shape_cast %266 : vector<1x2x32xf32> to vector<2x32xf32>
    %268 = vector.shape_cast %262 : vector<2x32xf32> to vector<1x2x32xf32>
    tpu.vector_store %arg7[%265, %c0_159, %c0_160], %268 {strides = array<i32>} : memref<8x2x32xf32, #tpu.memory_space<vmem>>, vector<1x2x32xf32>,
    %c7_i32 = arith.constant 7 : i32
    %269 = arith.index_cast %c7_i32 : i32 to index
    %c0_161 = arith.constant 0 : index
    %c0_162 = arith.constant 0 : index
    %270 = vector.load %arg1[%269, %c0_161, %c0_162] : memref<8x2x16xf32, #tpu.memory_space<vmem>>, vector<1x2x16xf32>
    %271 = vector.shape_cast %270 : vector<1x2x16xf32> to vector<2x16xf32>
    %272 = arith.truncf %271 : vector<2x16xf32> to vector<2x16xbf16>
    %c0_163 = arith.constant 0 : index
    %c0_164 = arith.constant 0 : index
    %273 = vector.load %arg8[%c0_163, %c0_164] : memref<2x32xf32, #tpu.memory_space<vmem>>, vector<2x32xf32>
    %274 = arith.truncf %273 : vector<2x32xf32> to vector<2x32xbf16>
    %c0_165 = arith.constant 0 : index
    %c0_166 = arith.constant 0 : index
    %275 = vector.load %arg2[%c0_165, %c0_166] : memref<16x128xbf16, #tpu.memory_space<vmem>>, vector<16x128xbf16>
    %cst_167 = arith.constant dense<0.000000e+00> : vector<2x128xf32>
    %276 = tpu.matmul %272, %275, %cst_167 {dimension_numbers = #tpu.dot_dimension_numbers<[1], [0], [0], [1], [0, 0, 1, 1], [], []>} : vector<2x16xbf16>, vector<16x128xbf16>, vector<2x128xf32> -> vector<2x128xf32>
    %c0_168 = arith.constant 0 : index
    %c0_169 = arith.constant 0 : index
    %277 = vector.load %arg3[%c0_168, %c0_169] : memref<32x128xbf16, #tpu.memory_space<vmem>>, vector<32x128xbf16>
    %cst_170 = arith.constant dense<0.000000e+00> : vector<2x128xf32>
    %278 = tpu.matmul %274, %277, %cst_170 {dimension_numbers = #tpu.dot_dimension_numbers<[1], [0], [0], [1], [0, 0, 1, 1], [], []>} : vector<2x32xbf16>, vector<32x128xbf16>, vector<2x128xf32> -> vector<2x128xf32>
    %279 = arith.addf %276, %278 : vector<2x128xf32>
    %c0_171 = arith.constant 0 : index
    %c0_172 = arith.constant 0 : index
    %280 = vector.load %arg4[%c0_171, %c0_172] : memref<1x128xf32, #tpu.memory_space<vmem>>, vector<1x128xf32>
    %281 = vector.broadcast %280 : vector<1x128xf32> to vector<2x128xf32>
    %282 = arith.addf %279, %281 : vector<2x128xf32>
    %cst_173 = arith.constant 5.000000e-01 : f32
    %283 = vector.broadcast %cst_173 : f32 to vector<2x128xf32>
    %284 = arith.mulf %283, %282 : vector<2x128xf32>
    %285 = math.tanh %284 : vector<2x128xf32>
    %cst_174 = arith.constant 1.000000e+00 : f32
    %286 = vector.broadcast %cst_174 : f32 to vector<2x128xf32>
    %287 = arith.addf %285, %286 : vector<2x128xf32>
    %cst_175 = arith.constant 5.000000e-01 : f32
    %288 = vector.broadcast %cst_175 : f32 to vector<2x128xf32>
    %289 = arith.mulf %288, %287 : vector<2x128xf32>
    %290 = math.tanh %282 : vector<2x128xf32>
    %291 = vector.extract_strided_slice %289 {offsets = [0, 0], sizes = [2, 32], strides = [1, 1]} : vector<2x128xf32> to vector<2x32xf32>
    %292 = vector.extract_strided_slice %289 {offsets = [0, 32], sizes = [2, 32], strides = [1, 1]} : vector<2x128xf32> to vector<2x32xf32>
    %293 = vector.extract_strided_slice %290 {offsets = [0, 64], sizes = [2, 32], strides = [1, 1]} : vector<2x128xf32> to vector<2x32xf32>
    %294 = vector.extract_strided_slice %289 {offsets = [0, 96], sizes = [2, 32], strides = [1, 1]} : vector<2x128xf32> to vector<2x32xf32>
    %c0_176 = arith.constant 0 : index
    %c0_177 = arith.constant 0 : index
    %295 = vector.load %arg9[%c0_176, %c0_177] : memref<2x32xf32, #tpu.memory_space<vmem>>, vector<2x32xf32>
    %296 = arith.mulf %295, %292 : vector<2x32xf32>
    %297 = arith.mulf %291, %293 : vector<2x32xf32>
    %298 = arith.addf %296, %297 : vector<2x32xf32>
    %299 = math.tanh %298 : vector<2x32xf32>
    %300 = arith.mulf %294, %299 : vector<2x32xf32>
    %c0_178 = arith.constant 0 : index
    %c0_179 = arith.constant 0 : index
    %301 = vector.load %arg9[%c0_178, %c0_179] : memref<2x32xf32, #tpu.memory_space<vmem>>, vector<2x32xf32>
    tpu.vector_store %arg9[%c0_178, %c0_179], %298 {strides = array<i32>} : memref<2x32xf32, #tpu.memory_space<vmem>>, vector<2x32xf32>,
    %c0_180 = arith.constant 0 : index
    %c0_181 = arith.constant 0 : index
    %302 = vector.load %arg8[%c0_180, %c0_181] : memref<2x32xf32, #tpu.memory_space<vmem>>, vector<2x32xf32>
    tpu.vector_store %arg8[%c0_180, %c0_181], %300 {strides = array<i32>} : memref<2x32xf32, #tpu.memory_space<vmem>>, vector<2x32xf32>,
    %303 = arith.index_cast %c7_i32 : i32 to index
    %c0_182 = arith.constant 0 : index
    %c0_183 = arith.constant 0 : index
    %304 = vector.load %arg7[%303, %c0_182, %c0_183] : memref<8x2x32xf32, #tpu.memory_space<vmem>>, vector<1x2x32xf32>
    %305 = vector.shape_cast %304 : vector<1x2x32xf32> to vector<2x32xf32>
    %306 = vector.shape_cast %300 : vector<2x32xf32> to vector<1x2x32xf32>
    tpu.vector_store %arg7[%303, %c0_182, %c0_183], %306 {strides = array<i32>} : memref<8x2x32xf32, #tpu.memory_space<vmem>>, vector<1x2x32xf32>,
    %c8_i32 = arith.constant 8 : i32
    return
  }
  func.func @transform_0(%arg0: i32) -> (i32, i32, i32) {
    %c0_i32 = arith.constant 0 : i32
    %c0_i32_0 = arith.constant 0 : i32
    %c0_i32_1 = arith.constant 0 : i32
    return %arg0, %c0_i32, %c0_i32_0 : i32, i32, i32
  }
  func.func @transform_1(%arg0: i32) -> (i32, i32) {
    %c0_i32 = arith.constant 0 : i32
    %c0_i32_0 = arith.constant 0 : i32
    %c0_i32_1 = arith.constant 0 : i32
    return %c0_i32, %c0_i32_0 : i32, i32
  }
  func.func @transform_2(%arg0: i32) -> (i32, i32) {
    %c0_i32 = arith.constant 0 : i32
    %c0_i32_0 = arith.constant 0 : i32
    %c0_i32_1 = arith.constant 0 : i32
    return %c0_i32, %c0_i32_0 : i32, i32
  }
  func.func @transform_3(%arg0: i32) -> (i32, i32) {
    %c0_i32 = arith.constant 0 : i32
    %c0_i32_0 = arith.constant 0 : i32
    %c0_i32_1 = arith.constant 0 : i32
    return %c0_i32, %c0_i32_0 : i32, i32
  }
  func.func @transform_4(%arg0: i32) -> (i32, i32) {
    %c0_i32 = arith.constant 0 : i32
    %c0_i32_0 = arith.constant 0 : i32
    %c0_i32_1 = arith.constant 0 : i32
    return %c0_i32, %c0_i32_0 : i32, i32
  }
  func.func @transform_5(%arg0: i32) -> (i32, i32) {
    %c0_i32 = arith.constant 0 : i32
    %c0_i32_0 = arith.constant 0 : i32
    %c0_i32_1 = arith.constant 0 : i32
    return %c0_i32, %c0_i32_0 : i32, i32
  }
  func.func @transform_6(%arg0: i32) -> (i32, i32, i32) {
    %c0_i32 = arith.constant 0 : i32
    %c0_i32_0 = arith.constant 0 : i32
    %c0_i32_1 = arith.constant 0 : i32
    return %arg0, %c0_i32, %c0_i32_0 : i32, i32, i32
  }
}

</mosaic_0001>

<llo_original>
// kernel: tpu_custom_call.1
$region0: #{tpu_custom_call.1}
  #allocation0 [shape = 'u32[]', space=smem, size = 0x4, offset = 0x4, fixed_abs, tag = 'smem constant byte address 0x4 - core index']
  #allocation1 [shape = 'u32[144,128]{1,0:T(1,128)}', space=vmem, size = 0x12000, scoped, tag = 'internal scratch']
  #allocation2 [shape = 'f32[2,32]{1,0:T(2,128)}', space=vmem, size = 0x400, scoped, tag = 'scratch operand']
  #allocation3 [shape = 'f32[2,32]{1,0:T(2,128)}', space=vmem, size = 0x400, scoped, tag = 'scratch operand']
  %s0 = inlined_call_operand.hbm [shape: f32[8,2,16], index: 0, kind: input, shape index: {}]
  %s1 = inlined_call_operand.hbm [shape: bf16[16,128], index: 1, kind: input, shape index: {}]
  %s2 = inlined_call_operand.hbm [shape: bf16[32,128], index: 2, kind: input, shape index: {}]
  %s3 = inlined_call_operand.vmem [shape: f32[1,128], index: 3, kind: input, shape index: {}]
  %s4 = inlined_call_operand.vmem [shape: f32[2,32], index: 4, kind: input, shape index: {}]
  %s5 = inlined_call_operand.vmem [shape: f32[2,32], index: 5, kind: input, shape index: {}]
  %s6 = inlined_call_operand.hbm [shape: f32[8,2,32], index: 6, kind: output, shape index: {}]
  %s7 = sld [smem:[#allocation0]]
  $region50: #{tpu_custom_call.1} parent=0
    _
  %s9 = ssub.s32 1, %s7
  %s10 = scalar_select 0, %s9, %s7
  $region1: #{tpu_custom_call.1} parent=0
    #allocation4 [shape = 'u8[8192]{0}', space=vmem, size = 0x2000, scoped, tag = 'input window, operand 0, single buffered']
    #allocation5 [shape = 's32[1]{0}', space=sflag, size = 0x4, scoped, tag = 'scoped memory for tpu_custom_call.1']
    #allocation6 [shape = 's32[1]{0}', space=sflag, size = 0x4, scoped, tag = 'scoped memory for tpu_custom_call.1']
    #allocation7 [shape = 'u8[4096]{0}', space=vmem, size = 0x1000, scoped, tag = 'input window, operand 1, single buffered']
    #allocation8 [shape = 's32[1]{0}', space=sflag, size = 0x4, scoped, tag = 'scoped memory for tpu_custom_call.1']
    #allocation9 [shape = 'u8[8192]{0}', space=vmem, size = 0x2000, scoped, tag = 'input window, operand 2, single buffered']
    #allocation10 [shape = 'u8[8192]{0}', space=vmem, size = 0x2000, scoped, tag = 'output window, operand 0, single buffered']
    %11 = vsyncpa [#allocation5], 0
    %12 = vsyncpa [#allocation8], 0
    %13 = vsyncpa [#allocation6], 0
    // Predicated region
    $region2: #{tpu_custom_call.1} parent=1 // pred_check
      _
    $region3: #{tpu_custom_call.1} parent=1 // pred_check_branch
      %15 = sbr.rel (0) target = $region5
    $region4: #{tpu_custom_call.1} parent=1 // pred_region
      %s17 = ssub.s32 256, 256
      %18 = vsyncadd [#allocation5], %s17
      %s19 = sshll.u32 [#allocation4], 4
      %s20 = int_to_ptr.vmem [resolvable:$true] %s19
      %25 = dma.hbm_to_vmem [thread:$0]  %s0, 256, %s20, [#allocation5], 32, 32, 2
    $region5: #{tpu_custom_call.1} parent=1 // pred_fallthru
      _
    // Predicated region
    $region6: #{tpu_custom_call.1} parent=1 // pred_check
      _
    $region7: #{tpu_custom_call.1} parent=1 // pred_check_branch
      %27 = sbr.rel (0) target = $region9
    $region8: #{tpu_custom_call.1} parent=1 // pred_region
      %s29 = ssub.s32 128, 128
      %30 = vsyncadd [#allocation8], %s29
      %s31 = sshll.u32 [#allocation7], 4
      %s32 = int_to_ptr.vmem [resolvable:$true] %s31
      %37 = dma.hbm_to_vmem [thread:$0]  %s1, 128, %s32, [#allocation8], 64, 64, 4
    $region9: #{tpu_custom_call.1} parent=1 // pred_fallthru
      _
    // Predicated region
    $region10: #{tpu_custom_call.1} parent=1 // pred_check
      _
    $region11: #{tpu_custom_call.1} parent=1 // pred_check_branch
      %39 = sbr.rel (0) target = $region13
    $region12: #{tpu_custom_call.1} parent=1 // pred_region
      %s41 = ssub.s32 256, 256
      %42 = vsyncadd [#allocation8], %s41
      %s43 = sshll.u32 [#allocation9], 4
      %s44 = int_to_ptr.vmem [resolvable:$true] %s43
      %49 = dma.hbm_to_vmem [thread:$0]  %s2, 256, %s44, [#allocation8], 64, 64, 4
    $region13: #{tpu_custom_call.1} parent=1 // pred_fallthru
      _
    // Predicated region
    $region14: #{tpu_custom_call.1} parent=1 // pred_check
      _
    $region15: #{tpu_custom_call.1} parent=1 // pred_check_branch
      %51 = sbr.rel (0) target = $region17
    $region16: #{tpu_custom_call.1} parent=1 // pred_region
      _
    $region17: #{tpu_custom_call.1} parent=1 // pred_fallthru
      _
    // Predicated region
    $region18: #{tpu_custom_call.1} parent=1 // pred_check
      _
    $region19: #{tpu_custom_call.1} parent=1 // pred_check_branch
      %53 = sbr.rel (0) target = $region21
    $region20: #{tpu_custom_call.1} parent=1 // pred_region
      _
    $region21: #{tpu_custom_call.1} parent=1 // pred_fallthru
      _
    // Predicated region
    $region22: #{tpu_custom_call.1} parent=1 // pred_check
      _
    $region23: #{tpu_custom_call.1} parent=1 // pred_check_branch
      %55 = sbr.rel (0) target = $region25
    $region24: #{tpu_custom_call.1} parent=1 // pred_region
      _
    $region25: #{tpu_custom_call.1} parent=1 // pred_fallthru
      _
    // Predicated region
    $region26: #{tpu_custom_call.1} parent=1 // pred_check
      _
    $region27: #{tpu_custom_call.1} parent=1 // pred_check_branch
      %57 = sbr.rel (0) target = $region29
    $region28: #{tpu_custom_call.1} parent=1 // pred_region
      %58 = dma.done [#allocation5], 256
    $region29: #{tpu_custom_call.1} parent=1 // pred_fallthru
      _
    // Predicated region
    $region30: #{tpu_custom_call.1} parent=1 // pred_check
      _
    $region31: #{tpu_custom_call.1} parent=1 // pred_check_branch
      %60 = sbr.rel (0) target = $region33
    $region32: #{tpu_custom_call.1} parent=1 // pred_region
      %61 = dma.done [#allocation8], 128
    $region33: #{tpu_custom_call.1} parent=1 // pred_fallthru
      _
    // Predicated region
    $region34: #{tpu_custom_call.1} parent=1 // pred_check
      _
    $region35: #{tpu_custom_call.1} parent=1 // pred_check_branch
      %63 = sbr.rel (0) target = $region37
    $region36: #{tpu_custom_call.1} parent=1 // pred_region
      %64 = dma.done [#allocation8], 256
    $region37: #{tpu_custom_call.1} parent=1 // pred_fallthru
      _
    %p66 = scmp.eq.s32.totalorder 0, 0
    // Predicated region
    $region38: #{tpu_custom_call.1} parent=1 // pred_check
      %p67 = pneg %p66
    $region39: #{tpu_custom_call.1} parent=1 // pred_check_branch
      %69 = sbr.rel (%p67) target = $region41
    $region40: #{tpu_custom_call.1} parent=1 // pred_region
      %v70 = vld [vmem:[%s4] sm:$0x3]
      %vm71 = vcmask 254976
      %72 = vst.msk [vmem:[#allocation2] sm:$0x3] %vm71, %v70
      %v73 = vld [vmem:[%s5] sm:$0x3]
      %74 = vst.msk [vmem:[#allocation3] sm:$0x3] %vm71, %v73
    $region41: #{tpu_custom_call.1} parent=1 // pred_fallthru
      _
    %v75 = vld [vmem:[#allocation4] sm:$0x3]
    %v76 = vpack.c.bf16 %v75, %v75
    %v77 = vld [vmem:[#allocation2] sm:$0x3]
    %v78 = vpack.c.bf16 %v77, %v77
    %v79 = vld [vmem:[#allocation7] sm:$0xf]
    %v80 = vld [vmem:[#allocation7 + $0x4] sm:$0xf]
    %v81 = vld [vmem:[#allocation9] sm:$0xf]
    %v82 = vld [vmem:[#allocation9 + $0x4] sm:$0xf]
    %v83 = vld [vmem:[#allocation9 + $0x8] sm:$0xf]
    %v84 = vld [vmem:[#allocation9 + $0xc] sm:$0xf]
    %v89 = vunpack.c.l.b16 %v81
    %v90 = vunpack.c.l.b16 %v82
    %v91 = vunpack.c.l.b16 %v83
    %v92 = vunpack.c.l.b16 %v84
    %v93 = vpack.c.b16 %v90, %v89
    %v94 = vpack.c.b16 %v92, %v91
    %vm97 = vcmask 261120
    %v99 = vsel %vm97, %v78, 0
    %101 = vmatprep.subr.bf16.mxu0 0
    %102 = vmatpush1.bf16.msra.mxu0 %v93
    %103 = vmatprep.subr.bf16.mxu0 0
    %104 = vmatpush1.bf16.msra.mxu0 %v94
    %105 = vmatprep.subr.bf16.mxu0 0
    %106 = vmatpush1.bf16.msra.mxu0 0
    %107 = vmatprep.subr.bf16.mxu0 0
    %108 = vmatpush1.bf16.msra.mxu0 0
    %109 = vmatprep.subr.bf16.mxu0 0
    %110 = vmatpush1.bf16.msra.mxu0 0
    %111 = vmatprep.subr.bf16.mxu0 0
    %112 = vmatpush1.bf16.msra.mxu0 0
    %113 = vmatprep.subr.bf16.mxu0 0
    %114 = vmatpush1.bf16.msra.mxu0 0
    %115 = vmatprep.subr.bf16.mxu0 0
    %116 = vmatpush1.bf16.msra.mxu0 0
    %117 = vmatprep.subr.bf16.mxu0 0
    %118 = vmatpush1.bf16.msra.mxu0 0
    %119 = vmatprep.subr.bf16.mxu0 0
    %120 = vmatpush1.bf16.msra.mxu0 0
    %121 = vmatprep.subr.bf16.mxu0 0
    %122 = vmatpush1.bf16.msra.mxu0 0
    %123 = vmatprep.subr.bf16.mxu0 0
    %124 = vmatpush1.bf16.msra.mxu0 0
    %125 = vmatprep.subr.bf16.mxu0 0
    %126 = vmatpush1.bf16.msra.mxu0 0
    %127 = vmatprep.subr.bf16.mxu0 0
    %128 = vmatpush1.bf16.msra.mxu0 0
    %129 = vmatprep.subr.bf16.mxu0 0
    %130 = vmatpush1.bf16.msra.mxu0 0
    %131 = vmatprep.subr.bf16.mxu0 0
    %132 = vmatpush1.bf16.msra.mxu0 0
    %133 = vmatprep.mubr.bf16.mxu0 0
    %134 = vmatmul.mubr.bf16.gmra.mrb[0].mxu0 %v99
    %v135 = vpop.f32.mrb[0].mxu0
    %v136 = vadd.f32 0.0, %v135
    %v137 = vpop.f32.mrb[0].mxu0
    %v138 = vpop.f32.mrb[0].mxu0
    %v139 = vpop.f32.mrb[0].mxu0
    %140 = vdwg.mxu0
    %v143 = vunpack.c.l.b16 %v79
    %v144 = vunpack.c.l.b16 %v80
    %v145 = vpack.c.b16 %v144, %v143
    %vm147 = vcmask 130048
    %v149 = vsel %vm147, %v76, 0
    %151 = vmatprep.subr.bf16.mxu0 0
    %152 = vmatpush1.bf16.msra.mxu0 %v145
    %153 = vmatprep.subr.bf16.mxu0 0
    %154 = vmatpush1.bf16.msra.mxu0 0
    %155 = vmatprep.subr.bf16.mxu0 0
    %156 = vmatpush1.bf16.msra.mxu0 0
    %157 = vmatprep.subr.bf16.mxu0 0
    %158 = vmatpush1.bf16.msra.mxu0 0
    %159 = vmatprep.subr.bf16.mxu0 0
    %160 = vmatpush1.bf16.msra.mxu0 0
    %161 = vmatprep.subr.bf16.mxu0 0
    %162 = vmatpush1.bf16.msra.mxu0 0
    %163 = vmatprep.subr.bf16.mxu0 0
    %164 = vmatpush1.bf16.msra.mxu0 0
    %165 = vmatprep.subr.bf16.mxu0 0
    %166 = vmatpush1.bf16.msra.mxu0 0
    %167 = vmatprep.subr.bf16.mxu0 0
    %168 = vmatpush1.bf16.msra.mxu0 0
    %169 = vmatprep.subr.bf16.mxu0 0
    %170 = vmatpush1.bf16.msra.mxu0 0
    %171 = vmatprep.subr.bf16.mxu0 0
    %172 = vmatpush1.bf16.msra.mxu0 0
    %173 = vmatprep.subr.bf16.mxu0 0
    %174 = vmatpush1.bf16.msra.mxu0 0
    %175 = vmatprep.subr.bf16.mxu0 0
    %176 = vmatpush1.bf16.msra.mxu0 0
    %177 = vmatprep.subr.bf16.mxu0 0
    %178 = vmatpush1.bf16.msra.mxu0 0
    %179 = vmatprep.subr.bf16.mxu0 0
    %180 = vmatpush1.bf16.msra.mxu0 0
    %181 = vmatprep.subr.bf16.mxu0 0
    %182 = vmatpush1.bf16.msra.mxu0 0
    %183 = vmatprep.mubr.bf16.mxu0 0
    %184 = vmatmul.mubr.bf16.gmra.mrb[0].mxu0 %v149
    %v185 = vpop.f32.mrb[0].mxu0
    %v186 = vadd.f32 %v136, %v185
    %v187 = vpop.f32.mrb[0].mxu0
    %v188 = vpop.f32.mrb[0].mxu0
    %v189 = vpop.f32.mrb[0].mxu0
    %190 = vdwg.mxu0
    %v191 = vld [vmem:[%s3] sm:$0x1]
    %v193 = vlaneseq
    %v194 = vshrl.u32 %v193, 7
    %v195 = vsub.s32 0, %v194
    %v196 = vrot.slane %v191, %v195
    %v198 = vadd.f32 %v186, %v196
    %v199 = vmul.f32 %v198, 0.5
    %v200 = vtanh.pop %v199
    %v201 = vadd.f32 %v200, 1.0
    %v202 = vmul.f32 %v201, 0.5
    %v203 = vtanh.pop %v198
    %v204 = vld [vmem:[#allocation3] sm:$0x3]
    %206 = vrot.lane.b32.xlu0 %v202, 96
    %v207 = vpop.permute.xlu0 %206
    %v209 = vmul.f32 %v204, %v207
    %211 = vrot.lane.b32.xlu0 %v203, 64
    %v212 = vpop.permute.xlu0 %211
    %v214 = vmul.f32 %v202, %v212
    %v215 = vadd.f32 %v209, %v214
    %v216 = vtanh.pop %v215
    %218 = vrot.lane.b32.xlu0 %v216, 96
    %v219 = vpop.permute.xlu0 %218
    %v221 = vmul.f32 %v202, %v219
    %vm222 = vcmask 254976
    %223 = vst.msk [vmem:[#allocation3] sm:$0x3] %vm222, %v215
    %225 = vrot.lane.b32.xlu0 %v221, 32
    %v226 = vpop.permute.xlu0 %225
    %228 = vst.msk [vmem:[#allocation2] sm:$0x3] %vm222, %v226
    %229 = vst.msk [vmem:[#allocation10] sm:$0x3] %vm222, %v226
    %s230 = scalar_lea.vmem [#allocation4], 2
    %v231 = vld [vmem:[%s230] sm:$0x3]
    %v232 = vpack.c.bf16 %v231, %v231
    %v233 = vld [vmem:[#allocation2] sm:$0x3]
    %v234 = vpack.c.bf16 %v233, %v233
    %v235 = vld [vmem:[#allocation7] sm:$0xf]
    %v236 = vld [vmem:[#allocation7 + $0x4] sm:$0xf]
    %v237 = vld [vmem:[#allocation9] sm:$0xf]
    %v238 = vld [vmem:[#allocation9 + $0x4] sm:$0xf]
    %v239 = vld [vmem:[#allocation9 + $0x8] sm:$0xf]
    %v240 = vld [vmem:[#allocation9 + $0xc] sm:$0xf]
    %v245 = vunpack.c.l.b16 %v237
    %v246 = vunpack.c.l.b16 %v238
    %v247 = vunpack.c.l.b16 %v239
    %v248 = vunpack.c.l.b16 %v240
    %v249 = vpack.c.b16 %v246, %v245
    %v250 = vpack.c.b16 %v248, %v247
    %v254 = vsel %vm97, %v234, 0
    %256 = vmatprep.subr.bf16.mxu0 0
    %257 = vmatpush1.bf16.msra.mxu0 %v249
    %258 = vmatprep.subr.bf16.mxu0 0
    %259 = vmatpush1.bf16.msra.mxu0 %v250
    %260 = vmatprep.subr.bf16.mxu0 0
    %261 = vmatpush1.bf16.msra.mxu0 0
    %262 = vmatprep.subr.bf16.mxu0 0
    %263 = vmatpush1.bf16.msra.mxu0 0
    %264 = vmatprep.subr.bf16.mxu0 0
    %265 = vmatpush1.bf16.msra.mxu0 0
    %266 = vmatprep.subr.bf16.mxu0 0
    %267 = vmatpush1.bf16.msra.mxu0 0
    %268 = vmatprep.subr.bf16.mxu0 0
    %269 = vmatpush1.bf16.msra.mxu0 0
    %270 = vmatprep.subr.bf16.mxu0 0
    %271 = vmatpush1.bf16.msra.mxu0 0
    %272 = vmatprep.subr.bf16.mxu0 0
    %273 = vmatpush1.bf16.msra.mxu0 0
    %274 = vmatprep.subr.bf16.mxu0 0
    %275 = vmatpush1.bf16.msra.mxu0 0
    %276 = vmatprep.subr.bf16.mxu0 0
    %277 = vmatpush1.bf16.msra.mxu0 0
    %278 = vmatprep.subr.bf16.mxu0 0
    %279 = vmatpush1.bf16.msra.mxu0 0
    %280 = vmatprep.subr.bf16.mxu0 0
    %281 = vmatpush1.bf16.msra.mxu0 0
    %282 = vmatprep.subr.bf16.mxu0 0
    %283 = vmatpush1.bf16.msra.mxu0 0
    %284 = vmatprep.subr.bf16.mxu0 0
    %285 = vmatpush1.bf16.msra.mxu0 0
    %286 = vmatprep.subr.bf16.mxu0 0
    %287 = vmatpush1.bf16.msra.mxu0 0
    %288 = vmatprep.mubr.bf16.mxu0 0
    %289 = vmatmul.mubr.bf16.gmra.mrb[0].mxu0 %v254
    %v290 = vpop.f32.mrb[0].mxu0
    %v291 = vadd.f32 0.0, %v290
    %v292 = vpop.f32.mrb[0].mxu0
    %v293 = vpop.f32.mrb[0].mxu0
    %v294 = vpop.f32.mrb[0].mxu0
    %295 = vdwg.mxu0
    %v298 = vunpack.c.l.b16 %v235
    %v299 = vunpack.c.l.b16 %v236
    %v300 = vpack.c.b16 %v299, %v298
    %v303 = vsel %vm147, %v232, 0
    %305 = vmatprep.subr.bf16.mxu0 0
    %306 = vmatpush1.bf16.msra.mxu0 %v300
    %307 = vmatprep.subr.bf16.mxu0 0
    %308 = vmatpush1.bf16.msra.mxu0 0
    %309 = vmatprep.subr.bf16.mxu0 0
    %310 = vmatpush1.bf16.msra.mxu0 0
    %311 = vmatprep.subr.bf16.mxu0 0
    %312 = vmatpush1.bf16.msra.mxu0 0
    %313 = vmatprep.subr.bf16.mxu0 0
    %314 = vmatpush1.bf16.msra.mxu0 0
    %315 = vmatprep.subr.bf16.mxu0 0
    %316 = vmatpush1.bf16.msra.mxu0 0
    %317 = vmatprep.subr.bf16.mxu0 0
    %318 = vmatpush1.bf16.msra.mxu0 0
    %319 = vmatprep.subr.bf16.mxu0 0
    %320 = vmatpush1.bf16.msra.mxu0 0
    %321 = vmatprep.subr.bf16.mxu0 0
    %322 = vmatpush1.bf16.msra.mxu0 0
    %323 = vmatprep.subr.bf16.mxu0 0
    %324 = vmatpush1.bf16.msra.mxu0 0
    %325 = vmatprep.subr.bf16.mxu0 0
    %326 = vmatpush1.bf16.msra.mxu0 0
    %327 = vmatprep.subr.bf16.mxu0 0
    %328 = vmatpush1.bf16.msra.mxu0 0
    %329 = vmatprep.subr.bf16.mxu0 0
    %330 = vmatpush1.bf16.msra.mxu0 0
    %331 = vmatprep.subr.bf16.mxu0 0
    %332 = vmatpush1.bf16.msra.mxu0 0
    %333 = vmatprep.subr.bf16.mxu0 0
    %334 = vmatpush1.bf16.msra.mxu0 0
    %335 = vmatprep.subr.bf16.mxu0 0
    %336 = vmatpush1.bf16.msra.mxu0 0
    %337 = vmatprep.mubr.bf16.mxu0 0
    %338 = vmatmul.mubr.bf16.gmra.mrb[0].mxu0 %v303
    %v339 = vpop.f32.mrb[0].mxu0
    %v340 = vadd.f32 %v291, %v339
    %v341 = vpop.f32.mrb[0].mxu0
    %v342 = vpop.f32.mrb[0].mxu0
    %v343 = vpop.f32.mrb[0].mxu0
    %344 = vdwg.mxu0
    %v345 = vld [vmem:[%s3] sm:$0x1]
    %v347 = vlaneseq
    %v348 = vshrl.u32 %v347, 7
    %v349 = vsub.s32 0, %v348
    %v350 = vrot.slane %v345, %v349
    %v352 = vadd.f32 %v340, %v350
    %v353 = vmul.f32 %v352, 0.5
    %v354 = vtanh.pop %v353
    %v355 = vadd.f32 %v354, 1.0
    %v356 = vmul.f32 %v355, 0.5
    %v357 = vtanh.pop %v352
    %v358 = vld [vmem:[#allocation3] sm:$0x3]
    %360 = vrot.lane.b32.xlu0 %v356, 96
    %v361 = vpop.permute.xlu0 %360
    %v363 = vmul.f32 %v358, %v361
    %365 = vrot.lane.b32.xlu0 %v357, 64
    %v366 = vpop.permute.xlu0 %365
    %v368 = vmul.f32 %v356, %v366
    %v369 = vadd.f32 %v363, %v368
    %v370 = vtanh.pop %v369
    %372 = vrot.lane.b32.xlu0 %v370, 96
    %v373 = vpop.permute.xlu0 %372
    %v375 = vmul.f32 %v356, %v373
    %376 = vst.msk [vmem:[#allocation3] sm:$0x3] %vm222, %v369
    %378 = vrot.lane.b32.xlu0 %v375, 32
    %v379 = vpop.permute.xlu0 %378
    %381 = vst.msk [vmem:[#allocation2] sm:$0x3] %vm222, %v379
    %s382 = scalar_lea.vmem [#allocation10], 2
    %383 = vst.msk [vmem:[%s382] sm:$0x3] %vm222, %v379
    %s384 = scalar_lea.vmem [#allocation4], 4
    %v385 = vld [vmem:[%s384] sm:$0x3]
    %v386 = vpack.c.bf16 %v385, %v385
    %v387 = vld [vmem:[#allocation2] sm:$0x3]
    %v388 = vpack.c.bf16 %v387, %v387
    %v389 = vld [vmem:[#allocation7] sm:$0xf]
    %v390 = vld [vmem:[#allocation7 + $0x4] sm:$0xf]
    %v391 = vld [vmem:[#allocation9] sm:$0xf]
    %v392 = vld [vmem:[#allocation9 + $0x4] sm:$0xf]
    %v393 = vld [vmem:[#allocation9 + $0x8] sm:$0xf]
    %v394 = vld [vmem:[#allocation9 + $0xc] sm:$0xf]
    %v399 = vunpack.c.l.b16 %v391
    %v400 = vunpack.c.l.b16 %v392
    %v401 = vunpack.c.l.b16 %v393
    %v402 = vunpack.c.l.b16 %v394
    %v403 = vpack.c.b16 %v400, %v399
    %v404 = vpack.c.b16 %v402, %v401
    %v408 = vsel %vm97, %v388, 0
    %410 = vmatprep.subr.bf16.mxu0 0
    %411 = vmatpush1.bf16.msra.mxu0 %v403
    %412 = vmatprep.subr.bf16.mxu0 0
    %413 = vmatpush1.bf16.msra.mxu0 %v404
    %414 = vmatprep.subr.bf16.mxu0 0
    %415 = vmatpush1.bf16.msra.mxu0 0
    %416 = vmatprep.subr.bf16.mxu0 0
    %417 = vmatpush1.bf16.msra.mxu0 0
    %418 = vmatprep.subr.bf16.mxu0 0
    %419 = vmatpush1.bf16.msra.mxu0 0
    %420 = vmatprep.subr.bf16.mxu0 0
    %421 = vmatpush1.bf16.msra.mxu0 0
    %422 = vmatprep.subr.bf16.mxu0 0
    %423 = vmatpush1.bf16.msra.mxu0 0
    %424 = vmatprep.subr.bf16.mxu0 0
    %425 = vmatpush1.bf16.msra.mxu0 0
    %426 = vmatprep.subr.bf16.mxu0 0
    %427 = vmatpush1.bf16.msra.mxu0 0
    %428 = vmatprep.subr.bf16.mxu0 0
    %429 = vmatpush1.bf16.msra.mxu0 0
    %430 = vmatprep.subr.bf16.mxu0 0
    %431 = vmatpush1.bf16.msra.mxu0 0
    %432 = vmatprep.subr.bf16.mxu0 0
    %433 = vmatpush1.bf16.msra.mxu0 0
    %434 = vmatprep.subr.bf16.mxu0 0
    %435 = vmatpush1.bf16.msra.mxu0 0
    %436 = vmatprep.subr.bf16.mxu0 0
    %437 = vmatpush1.bf16.msra.mxu0 0
    %438 = vmatprep.subr.bf16.mxu0 0
    %439 = vmatpush1.bf16.msra.mxu0 0
    %440 = vmatprep.subr.bf16.mxu0 0
    %441 = vmatpush1.bf16.msra.mxu0 0
    %442 = vmatprep.mubr.bf16.mxu0 0
    %443 = vmatmul.mubr.bf16.gmra.mrb[0].mxu0 %v408
    %v444 = vpop.f32.mrb[0].mxu0
    %v445 = vadd.f32 0.0, %v444
    %v446 = vpop.f32.mrb[0].mxu0
    %v447 = vpop.f32.mrb[0].mxu0
    %v448 = vpop.f32.mrb[0].mxu0
    %449 = vdwg.mxu0
    %v452 = vunpack.c.l.b16 %v389
    %v453 = vunpack.c.l.b16 %v390
    %v454 = vpack.c.b16 %v453, %v452
    %v457 = vsel %vm147, %v386, 0
    %459 = vmatprep.subr.bf16.mxu0 0
    %460 = vmatpush1.bf16.msra.mxu0 %v454
    %461 = vmatprep.subr.bf16.mxu0 0
    %462 = vmatpush1.bf16.msra.mxu0 0
    %463 = vmatprep.subr.bf16.mxu0 0
    %464 = vmatpush1.bf16.msra.mxu0 0
    %465 = vmatprep.subr.bf16.mxu0 0
    %466 = vmatpush1.bf16.msra.mxu0 0
    %467 = vmatprep.subr.bf16.mxu0 0
    %468 = vmatpush1.bf16.msra.mxu0 0
    %469 = vmatprep.subr.bf16.mxu0 0
    %470 = vmatpush1.bf16.msra.mxu0 0
    %471 = vmatprep.subr.bf16.mxu0 0
    %472 = vmatpush1.bf16.msra.mxu0 0
    %473 = vmatprep.subr.bf16.mxu0 0
    %474 = vmatpush1.bf16.msra.mxu0 0
    %475 = vmatprep.subr.bf16.mxu0 0
    %476 = vmatpush1.bf16.msra.mxu0 0
    %477 = vmatprep.subr.bf16.mxu0 0
    %478 = vmatpush1.bf16.msra.mxu0 0
    %479 = vmatprep.subr.bf16.mxu0 0
    %480 = vmatpush1.bf16.msra.mxu0 0
    %481 = vmatprep.subr.bf16.mxu0 0
    %482 = vmatpush1.bf16.msra.mxu0 0
    %483 = vmatprep.subr.bf16.mxu0 0
    %484 = vmatpush1.bf16.msra.mxu0 0
    %485 = vmatprep.subr.bf16.mxu0 0
    %486 = vmatpush1.bf16.msra.mxu0 0
    %487 = vmatprep.subr.bf16.mxu0 0
    %488 = vmatpush1.bf16.msra.mxu0 0
    %489 = vmatprep.subr.bf16.mxu0 0
    %490 = vmatpush1.bf16.msra.mxu0 0
    %491 = vmatprep.mubr.bf16.mxu0 0
    %492 = vmatmul.mubr.bf16.gmra.mrb[0].mxu0 %v457
    %v493 = vpop.f32.mrb[0].mxu0
    %v494 = vadd.f32 %v445, %v493
    %v495 = vpop.f32.mrb[0].mxu0
    %v496 = vpop.f32.mrb[0].mxu0
    %v497 = vpop.f32.mrb[0].mxu0
    %498 = vdwg.mxu0
    %v499 = vld [vmem:[%s3] sm:$0x1]
    %v501 = vlaneseq
    %v502 = vshrl.u32 %v501, 7
    %v503 = vsub.s32 0, %v502
    %v504 = vrot.slane %v499, %v503
    %v506 = vadd.f32 %v494, %v504
    %v507 = vmul.f32 %v506, 0.5
    %v508 = vtanh.pop %v507
    %v509 = vadd.f32 %v508, 1.0
    %v510 = vmul.f32 %v509, 0.5
    %v511 = vtanh.pop %v506
    %v512 = vld [vmem:[#allocation3] sm:$0x3]
    %514 = vrot.lane.b32.xlu0 %v510, 96
    %v515 = vpop.permute.xlu0 %514
    %v517 = vmul.f32 %v512, %v515
    %519 = vrot.lane.b32.xlu0 %v511, 64
    %v520 = vpop.permute.xlu0 %519
    %v522 = vmul.f32 %v510, %v520
    %v523 = vadd.f32 %v517, %v522
    %v524 = vtanh.pop %v523
    %526 = vrot.lane.b32.xlu0 %v524, 96
    %v527 = vpop.permute.xlu0 %526
    %v529 = vmul.f32 %v510, %v527
    %530 = vst.msk [vmem:[#allocation3] sm:$0x3] %vm222, %v523
    %532 = vrot.lane.b32.xlu0 %v529, 32
    %v533 = vpop.permute.xlu0 %532
    %535 = vst.msk [vmem:[#allocation2] sm:$0x3] %vm222, %v533
    %s536 = scalar_lea.vmem [#allocation10], 4
    %537 = vst.msk [vmem:[%s536] sm:$0x3] %vm222, %v533
    %s538 = scalar_lea.vmem [#allocation4], 6
    %v539 = vld [vmem:[%s538] sm:$0x3]
    %v540 = vpack.c.bf16 %v539, %v539
    %v541 = vld [vmem:[#allocation2] sm:$0x3]
    %v542 = vpack.c.bf16 %v541, %v541
    %v543 = vld [vmem:[#allocation7] sm:$0xf]
    %v544 = vld [vmem:[#allocation7 + $0x4] sm:$0xf]
    %v545 = vld [vmem:[#allocation9] sm:$0xf]
    %v546 = vld [vmem:[#allocation9 + $0x4] sm:$0xf]
    %v547 = vld [vmem:[#allocation9 + $0x8] sm:$0xf]
    %v548 = vld [vmem:[#allocation9 + $0xc] sm:$0xf]
    %v553 = vunpack.c.l.b16 %v545
    %v554 = vunpack.c.l.b16 %v546
    %v555 = vunpack.c.l.b16 %v547
    %v556 = vunpack.c.l.b16 %v548
    %v557 = vpack.c.b16 %v554, %v553
    %v558 = vpack.c.b16 %v556, %v555
    %v562 = vsel %vm97, %v542, 0
    %564 = vmatprep.subr.bf16.mxu0 0
    %565 = vmatpush1.bf16.msra.mxu0 %v557
    %566 = vmatprep.subr.bf16.mxu0 0
    %567 = vmatpush1.bf16.msra.mxu0 %v558
    %568 = vmatprep.subr.bf16.mxu0 0
    %569 = vmatpush1.bf16.msra.mxu0 0
    %570 = vmatprep.subr.bf16.mxu0 0
    %571 = vmatpush1.bf16.msra.mxu0 0
    %572 = vmatprep.subr.bf16.mxu0 0
    %573 = vmatpush1.bf16.msra.mxu0 0
    %574 = vmatprep.subr.bf16.mxu0 0
    %575 = vmatpush1.bf16.msra.mxu0 0
    %576 = vmatprep.subr.bf16.mxu0 0
    %577 = vmatpush1.bf16.msra.mxu0 0
    %578 = vmatprep.subr.bf16.mxu0 0
    %579 = vmatpush1.bf16.msra.mxu0 0
    %580 = vmatprep.subr.bf16.mxu0 0
    %581 = vmatpush1.bf16.msra.mxu0 0
    %582 = vmatprep.subr.bf16.mxu0 0
    %583 = vmatpush1.bf16.msra.mxu0 0
    %584 = vmatprep.subr.bf16.mxu0 0
    %585 = vmatpush1.bf16.msra.mxu0 0
    %586 = vmatprep.subr.bf16.mxu0 0
    %587 = vmatpush1.bf16.msra.mxu0 0
    %588 = vmatprep.subr.bf16.mxu0 0
    %589 = vmatpush1.bf16.msra.mxu0 0
    %590 = vmatprep.subr.bf16.mxu0 0
    %591 = vmatpush1.bf16.msra.mxu0 0
    %592 = vmatprep.subr.bf16.mxu0 0
    %593 = vmatpush1.bf16.msra.mxu0 0
    %594 = vmatprep.subr.bf16.mxu0 0
    %595 = vmatpush1.bf16.msra.mxu0 0
    %596 = vmatprep.mubr.bf16.mxu0 0
    %597 = vmatmul.mubr.bf16.gmra.mrb[0].mxu0 %v562
    %v598 = vpop.f32.mrb[0].mxu0
    %v599 = vadd.f32 0.0, %v598
    %v600 = vpop.f32.mrb[0].mxu0
    %v601 = vpop.f32.mrb[0].mxu0
    %v602 = vpop.f32.mrb[0].mxu0
    %603 = vdwg.mxu0
    %v606 = vunpack.c.l.b16 %v543
    %v607 = vunpack.c.l.b16 %v544
    %v608 = vpack.c.b16 %v607, %v606
    %v611 = vsel %vm147, %v540, 0
    %613 = vmatprep.subr.bf16.mxu0 0
    %614 = vmatpush1.bf16.msra.mxu0 %v608
    %615 = vmatprep.subr.bf16.mxu0 0
    %616 = vmatpush1.bf16.msra.mxu0 0
    %617 = vmatprep.subr.bf16.mxu0 0
    %618 = vmatpush1.bf16.msra.mxu0 0
    %619 = vmatprep.subr.bf16.mxu0 0
    %620 = vmatpush1.bf16.msra.mxu0 0
    %621 = vmatprep.subr.bf16.mxu0 0
    %622 = vmatpush1.bf16.msra.mxu0 0
    %623 = vmatprep.subr.bf16.mxu0 0
    %624 = vmatpush1.bf16.msra.mxu0 0
    %625 = vmatprep.subr.bf16.mxu0 0
    %626 = vmatpush1.bf16.msra.mxu0 0
    %627 = vmatprep.subr.bf16.mxu0 0
    %628 = vmatpush1.bf16.msra.mxu0 0
    %629 = vmatprep.subr.bf16.mxu0 0
    %630 = vmatpush1.bf16.msra.mxu0 0
    %631 = vmatprep.subr.bf16.mxu0 0
    %632 = vmatpush1.bf16.msra.mxu0 0
    %633 = vmatprep.subr.bf16.mxu0 0
    %634 = vmatpush1.bf16.msra.mxu0 0
    %635 = vmatprep.subr.bf16.mxu0 0
    %636 = vmatpush1.bf16.msra.mxu0 0
    %637 = vmatprep.subr.bf16.mxu0 0
    %638 = vmatpush1.bf16.msra.mxu0 0
    %639 = vmatprep.subr.bf16.mxu0 0
    %640 = vmatpush1.bf16.msra.mxu0 0
    %641 = vmatprep.subr.bf16.mxu0 0
    %642 = vmatpush1.bf16.msra.mxu0 0
    %643 = vmatprep.subr.bf16.mxu0 0
    %644 = vmatpush1.bf16.msra.mxu0 0
    %645 = vmatprep.mubr.bf16.mxu0 0
    %646 = vmatmul.mubr.bf16.gmra.mrb[0].mxu0 %v611
    %v647 = vpop.f32.mrb[0].mxu0
    %v648 = vadd.f32 %v599, %v647
    %v649 = vpop.f32.mrb[0].mxu0
    %v650 = vpop.f32.mrb[0].mxu0
    %v651 = vpop.f32.mrb[0].mxu0
    %652 = vdwg.mxu0
    %v653 = vld [vmem:[%s3] sm:$0x1]
    %v655 = vlaneseq
    %v656 = vshrl.u32 %v655, 7
    %v657 = vsub.s32 0, %v656
    %v658 = vrot.slane %v653, %v657
    %v660 = vadd.f32 %v648, %v658
    %v661 = vmul.f32 %v660, 0.5
    %v662 = vtanh.pop %v661
    %v663 = vadd.f32 %v662, 1.0
    %v664 = vmul.f32 %v663, 0.5
    %v665 = vtanh.pop %v660
    %v666 = vld [vmem:[#allocation3] sm:$0x3]
    %668 = vrot.lane.b32.xlu0 %v664, 96
    %v669 = vpop.permute.xlu0 %668
    %v671 = vmul.f32 %v666, %v669
    %673 = vrot.lane.b32.xlu0 %v665, 64
    %v674 = vpop.permute.xlu0 %673
    %v676 = vmul.f32 %v664, %v674
    %v677 = vadd.f32 %v671, %v676
    %v678 = vtanh.pop %v677
    %680 = vrot.lane.b32.xlu0 %v678, 96
    %v681 = vpop.permute.xlu0 %680
    %v683 = vmul.f32 %v664, %v681
    %684 = vst.msk [vmem:[#allocation3] sm:$0x3] %vm222, %v677
    %686 = vrot.lane.b32.xlu0 %v683, 32
    %v687 = vpop.permute.xlu0 %686
    %689 = vst.msk [vmem:[#allocation2] sm:$0x3] %vm222, %v687
    %s690 = scalar_lea.vmem [#allocation10], 6
    %691 = vst.msk [vmem:[%s690] sm:$0x3] %vm222, %v687
    %s692 = scalar_lea.vmem [#allocation4], 8
    %v693 = vld [vmem:[%s692] sm:$0x3]
    %v694 = vpack.c.bf16 %v693, %v693
    %v695 = vld [vmem:[#allocation2] sm:$0x3]
    %v696 = vpack.c.bf16 %v695, %v695
    %v697 = vld [vmem:[#allocation7] sm:$0xf]
    %v698 = vld [vmem:[#allocation7 + $0x4] sm:$0xf]
    %v699 = vld [vmem:[#allocation9] sm:$0xf]
    %v700 = vld [vmem:[#allocation9 + $0x4] sm:$0xf]
    %v701 = vld [vmem:[#allocation9 + $0x8] sm:$0xf]
    %v702 = vld [vmem:[#allocation9 + $0xc] sm:$0xf]
    %v707 = vunpack.c.l.b16 %v699
    %v708 = vunpack.c.l.b16 %v700
    %v709 = vunpack.c.l.b16 %v701
    %v710 = vunpack.c.l.b16 %v702
    %v711 = vpack.c.b16 %v708, %v707
    %v712 = vpack.c.b16 %v710, %v709
    %v716 = vsel %vm97, %v696, 0
    %718 = vmatprep.subr.bf16.mxu0 0
    %719 = vmatpush1.bf16.msra.mxu0 %v711
    %720 = vmatprep.subr.bf16.mxu0 0
    %721 = vmatpush1.bf16.msra.mxu0 %v712
    %722 = vmatprep.subr.bf16.mxu0 0
    %723 = vmatpush1.bf16.msra.mxu0 0
    %724 = vmatprep.subr.bf16.mxu0 0
    %725 = vmatpush1.bf16.msra.mxu0 0
    %726 = vmatprep.subr.bf16.mxu0 0
    %727 = vmatpush1.bf16.msra.mxu0 0
    %728 = vmatprep.subr.bf16.mxu0 0
    %729 = vmatpush1.bf16.msra.mxu0 0
    %730 = vmatprep.subr.bf16.mxu0 0
    %731 = vmatpush1.bf16.msra.mxu0 0
    %732 = vmatprep.subr.bf16.mxu0 0
    %733 = vmatpush1.bf16.msra.mxu0 0
    %734 = vmatprep.subr.bf16.mxu0 0
    %735 = vmatpush1.bf16.msra.mxu0 0
    %736 = vmatprep.subr.bf16.mxu0 0
    %737 = vmatpush1.bf16.msra.mxu0 0
    %738 = vmatprep.subr.bf16.mxu0 0
    %739 = vmatpush1.bf16.msra.mxu0 0
    %740 = vmatprep.subr.bf16.mxu0 0
    %741 = vmatpush1.bf16.msra.mxu0 0
    %742 = vmatprep.subr.bf16.mxu0 0
    %743 = vmatpush1.bf16.msra.mxu0 0
    %744 = vmatprep.subr.bf16.mxu0 0
    %745 = vmatpush1.bf16.msra.mxu0 0
    %746 = vmatprep.subr.bf16.mxu0 0
    %747 = vmatpush1.bf16.msra.mxu0 0
    %748 = vmatprep.subr.bf16.mxu0 0
    %749 = vmatpush1.bf16.msra.mxu0 0
    %750 = vmatprep.mubr.bf16.mxu0 0
    %751 = vmatmul.mubr.bf16.gmra.mrb[0].mxu0 %v716
    %v752 = vpop.f32.mrb[0].mxu0
    %v753 = vadd.f32 0.0, %v752
    %v754 = vpop.f32.mrb[0].mxu0
    %v755 = vpop.f32.mrb[0].mxu0
    %v756 = vpop.f32.mrb[0].mxu0
    %757 = vdwg.mxu0
    %v760 = vunpack.c.l.b16 %v697
    %v761 = vunpack.c.l.b16 %v698
    %v762 = vpack.c.b16 %v761, %v760
    %v765 = vsel %vm147, %v694, 0
    %767 = vmatprep.subr.bf16.mxu0 0
    %768 = vmatpush1.bf16.msra.mxu0 %v762
    %769 = vmatprep.subr.bf16.mxu0 0
    %770 = vmatpush1.bf16.msra.mxu0 0
    %771 = vmatprep.subr.bf16.mxu0 0
    %772 = vmatpush1.bf16.msra.mxu0 0
    %773 = vmatprep.subr.bf16.mxu0 0
    %774 = vmatpush1.bf16.msra.mxu0 0
    %775 = vmatprep.subr.bf16.mxu0 0
    %776 = vmatpush1.bf16.msra.mxu0 0
    %777 = vmatprep.subr.bf16.mxu0 0
    %778 = vmatpush1.bf16.msra.mxu0 0
    %779 = vmatprep.subr.bf16.mxu0 0
    %780 = vmatpush1.bf16.msra.mxu0 0
    %781 = vmatprep.subr.bf16.mxu0 0
    %782 = vmatpush1.bf16.msra.mxu0 0
    %783 = vmatprep.subr.bf16.mxu0 0
    %784 = vmatpush1.bf16.msra.mxu0 0
    %785 = vmatprep.subr.bf16.mxu0 0
    %786 = vmatpush1.bf16.msra.mxu0 0
    %787 = vmatprep.subr.bf16.mxu0 0
    %788 = vmatpush1.bf16.msra.mxu0 0
    %789 = vmatprep.subr.bf16.mxu0 0
    %790 = vmatpush1.bf16.msra.mxu0 0
    %791 = vmatprep.subr.bf16.mxu0 0
    %792 = vmatpush1.bf16.msra.mxu0 0
    %793 = vmatprep.subr.bf16.mxu0 0
    %794 = vmatpush1.bf16.msra.mxu0 0
    %795 = vmatprep.subr.bf16.mxu0 0
    %796 = vmatpush1.bf16.msra.mxu0 0
    %797 = vmatprep.subr.bf16.mxu0 0
    %798 = vmatpush1.bf16.msra.mxu0 0
    %799 = vmatprep.mubr.bf16.mxu0 0
    %800 = vmatmul.mubr.bf16.gmra.mrb[0].mxu0 %v765
    %v801 = vpop.f32.mrb[0].mxu0
    %v802 = vadd.f32 %v753, %v801
    %v803 = vpop.f32.mrb[0].mxu0
    %v804 = vpop.f32.mrb[0].mxu0
    %v805 = vpop.f32.mrb[0].mxu0
    %806 = vdwg.mxu0
    %v807 = vld [vmem:[%s3] sm:$0x1]
    %v809 = vlaneseq
    %v810 = vshrl.u32 %v809, 7
    %v811 = vsub.s32 0, %v810
    %v812 = vrot.slane %v807, %v811
    %v814 = vadd.f32 %v802, %v812
    %v815 = vmul.f32 %v814, 0.5
    %v816 = vtanh.pop %v815
    %v817 = vadd.f32 %v816, 1.0
    %v818 = vmul.f32 %v817, 0.5
    %v819 = vtanh.pop %v814
    %v820 = vld [vmem:[#allocation3] sm:$0x3]
    %822 = vrot.lane.b32.xlu0 %v818, 96
    %v823 = vpop.permute.xlu0 %822
    %v825 = vmul.f32 %v820, %v823
    %827 = vrot.lane.b32.xlu0 %v819, 64
    %v828 = vpop.permute.xlu0 %827
    %v830 = vmul.f32 %v818, %v828
    %v831 = vadd.f32 %v825, %v830
    %v832 = vtanh.pop %v831
    %834 = vrot.lane.b32.xlu0 %v832, 96
    %v835 = vpop.permute.xlu0 %834
    %v837 = vmul.f32 %v818, %v835
    %838 = vst.msk [vmem:[#allocation3] sm:$0x3] %vm222, %v831
    %840 = vrot.lane.b32.xlu0 %v837, 32
    %v841 = vpop.permute.xlu0 %840
    %843 = vst.msk [vmem:[#allocation2] sm:$0x3] %vm222, %v841
    %s844 = scalar_lea.vmem [#allocation10], 8
    %845 = vst.msk [vmem:[%s844] sm:$0x3] %vm222, %v841
    %s846 = scalar_lea.vmem [#allocation4], 10
    %v847 = vld [vmem:[%s846] sm:$0x3]
    %v848 = vpack.c.bf16 %v847, %v847
    %v849 = vld [vmem:[#allocation2] sm:$0x3]
    %v850 = vpack.c.bf16 %v849, %v849
    %v851 = vld [vmem:[#allocation7] sm:$0xf]
    %v852 = vld [vmem:[#allocation7 + $0x4] sm:$0xf]
    %v853 = vld [vmem:[#allocation9] sm:$0xf]
    %v854 = vld [vmem:[#allocation9 + $0x4] sm:$0xf]
    %v855 = vld [vmem:[#allocation9 + $0x8] sm:$0xf]
    %v856 = vld [vmem:[#allocation9 + $0xc] sm:$0xf]
    %v861 = vunpack.c.l.b16 %v853
    %v862 = vunpack.c.l.b16 %v854
    %v863 = vunpack.c.l.b16 %v855
    %v864 = vunpack.c.l.b16 %v856
    %v865 = vpack.c.b16 %v862, %v861
    %v866 = vpack.c.b16 %v864, %v863
    %v870 = vsel %vm97, %v850, 0
    %872 = vmatprep.subr.bf16.mxu0 0
    %873 = vmatpush1.bf16.msra.mxu0 %v865
    %874 = vmatprep.subr.bf16.mxu0 0
    %875 = vmatpush1.bf16.msra.mxu0 %v866
    %876 = vmatprep.subr.bf16.mxu0 0
    %877 = vmatpush1.bf16.msra.mxu0 0
    %878 = vmatprep.subr.bf16.mxu0 0
    %879 = vmatpush1.bf16.msra.mxu0 0
    %880 = vmatprep.subr.bf16.mxu0 0
    %881 = vmatpush1.bf16.msra.mxu0 0
    %882 = vmatprep.subr.bf16.mxu0 0
    %883 = vmatpush1.bf16.msra.mxu0 0
    %884 = vmatprep.subr.bf16.mxu0 0
    %885 = vmatpush1.bf16.msra.mxu0 0
    %886 = vmatprep.subr.bf16.mxu0 0
    %887 = vmatpush1.bf16.msra.mxu0 0
    %888 = vmatprep.subr.bf16.mxu0 0
    %889 = vmatpush1.bf16.msra.mxu0 0
    %890 = vmatprep.subr.bf16.mxu0 0
    %891 = vmatpush1.bf16.msra.mxu0 0
    %892 = vmatprep.subr.bf16.mxu0 0
    %893 = vmatpush1.bf16.msra.mxu0 0
    %894 = vmatprep.subr.bf16.mxu0 0
    %895 = vmatpush1.bf16.msra.mxu0 0
    %896 = vmatprep.subr.bf16.mxu0 0
    %897 = vmatpush1.bf16.msra.mxu0 0
    %898 = vmatprep.subr.bf16.mxu0 0
    %899 = vmatpush1.bf16.msra.mxu0 0
    %900 = vmatprep.subr.bf16.mxu0 0
    %901 = vmatpush1.bf16.msra.mxu0 0
    %902 = vmatprep.subr.bf16.mxu0 0
    %903 = vmatpush1.bf16.msra.mxu0 0
    %904 = vmatprep.mubr.bf16.mxu0 0
    %905 = vmatmul.mubr.bf16.gmra.mrb[0].mxu0 %v870
    %v906 = vpop.f32.mrb[0].mxu0
    %v907 = vadd.f32 0.0, %v906
    %v908 = vpop.f32.mrb[0].mxu0
    %v909 = vpop.f32.mrb[0].mxu0
    %v910 = vpop.f32.mrb[0].mxu0
    %911 = vdwg.mxu0
    %v914 = vunpack.c.l.b16 %v851
    %v915 = vunpack.c.l.b16 %v852
    %v916 = vpack.c.b16 %v915, %v914
    %v919 = vsel %vm147, %v848, 0
    %921 = vmatprep.subr.bf16.mxu0 0
    %922 = vmatpush1.bf16.msra.mxu0 %v916
    %923 = vmatprep.subr.bf16.mxu0 0
    %924 = vmatpush1.bf16.msra.mxu0 0
    %925 = vmatprep.subr.bf16.mxu0 0
    %926 = vmatpush1.bf16.msra.mxu0 0
    %927 = vmatprep.subr.bf16.mxu0 0
    %928 = vmatpush1.bf16.msra.mxu0 0
    %929 = vmatprep.subr.bf16.mxu0 0
    %930 = vmatpush1.bf16.msra.mxu0 0
    %931 = vmatprep.subr.bf16.mxu0 0
    %932 = vmatpush1.bf16.msra.mxu0 0
    %933 = vmatprep.subr.bf16.mxu0 0
    %934 = vmatpush1.bf16.msra.mxu0 0
    %935 = vmatprep.subr.bf16.mxu0 0
    %936 = vmatpush1.bf16.msra.mxu0 0
    %937 = vmatprep.subr.bf16.mxu0 0
    %938 = vmatpush1.bf16.msra.mxu0 0
    %939 = vmatprep.subr.bf16.mxu0 0
    %940 = vmatpush1.bf16.msra.mxu0 0
    %941 = vmatprep.subr.bf16.mxu0 0
    %942 = vmatpush1.bf16.msra.mxu0 0
    %943 = vmatprep.subr.bf16.mxu0 0
    %944 = vmatpush1.bf16.msra.mxu0 0
    %945 = vmatprep.subr.bf16.mxu0 0
    %946 = vmatpush1.bf16.msra.mxu0 0
    %947 = vmatprep.subr.bf16.mxu0 0
    %948 = vmatpush1.bf16.msra.mxu0 0
    %949 = vmatprep.subr.bf16.mxu0 0
    %950 = vmatpush1.bf16.msra.mxu0 0
    %951 = vmatprep.subr.bf16.mxu0 0
    %952 = vmatpush1.bf16.msra.mxu0 0
    %953 = vmatprep.mubr.bf16.mxu0 0
    %954 = vmatmul.mubr.bf16.gmra.mrb[0].mxu0 %v919
    %v955 = vpop.f32.mrb[0].mxu0
    %v956 = vadd.f32 %v907, %v955
    %v957 = vpop.f32.mrb[0].mxu0
    %v958 = vpop.f32.mrb[0].mxu0
    %v959 = vpop.f32.mrb[0].mxu0
    %960 = vdwg.mxu0
    %v961 = vld [vmem:[%s3] sm:$0x1]
    %v963 = vlaneseq
    %v964 = vshrl.u32 %v963, 7
    %v965 = vsub.s32 0, %v964
    %v966 = vrot.slane %v961, %v965
    %v968 = vadd.f32 %v956, %v966
    %v969 = vmul.f32 %v968, 0.5
    %v970 = vtanh.pop %v969
    %v971 = vadd.f32 %v970, 1.0
    %v972 = vmul.f32 %v971, 0.5
    %v973 = vtanh.pop %v968
    %v974 = vld [vmem:[#allocation3] sm:$0x3]
    %976 = vrot.lane.b32.xlu0 %v972, 96
    %v977 = vpop.permute.xlu0 %976
    %v979 = vmul.f32 %v974, %v977
    %981 = vrot.lane.b32.xlu0 %v973, 64
    %v982 = vpop.permute.xlu0 %981
    %v984 = vmul.f32 %v972, %v982
    %v985 = vadd.f32 %v979, %v984
    %v986 = vtanh.pop %v985
    %988 = vrot.lane.b32.xlu0 %v986, 96
    %v989 = vpop.permute.xlu0 %988
    %v991 = vmul.f32 %v972, %v989
    %992 = vst.msk [vmem:[#allocation3] sm:$0x3] %vm222, %v985
    %994 = vrot.lane.b32.xlu0 %v991, 32
    %v995 = vpop.permute.xlu0 %994
    %997 = vst.msk [vmem:[#allocation2] sm:$0x3] %vm222, %v995
    %s998 = scalar_lea.vmem [#allocation10], 10
    %999 = vst.msk [vmem:[%s998] sm:$0x3] %vm222, %v995
    %s1000 = scalar_lea.vmem [#allocation4], 12
    %v1001 = vld [vmem:[%s1000] sm:$0x3]
    %v1002 = vpack.c.bf16 %v1001, %v1001
    %v1003 = vld [vmem:[#allocation2] sm:$0x3]
    %v1004 = vpack.c.bf16 %v1003, %v1003
    %v1005 = vld [vmem:[#allocation7] sm:$0xf]
    %v1006 = vld [vmem:[#allocation7 + $0x4] sm:$0xf]
    %v1007 = vld [vmem:[#allocation9] sm:$0xf]
    %v1008 = vld [vmem:[#allocation9 + $0x4] sm:$0xf]
    %v1009 = vld [vmem:[#allocation9 + $0x8] sm:$0xf]
    %v1010 = vld [vmem:[#allocation9 + $0xc] sm:$0xf]
    %v1015 = vunpack.c.l.b16 %v1007
    %v1016 = vunpack.c.l.b16 %v1008
    %v1017 = vunpack.c.l.b16 %v1009
    %v1018 = vunpack.c.l.b16 %v1010
    %v1019 = vpack.c.b16 %v1016, %v1015
    %v1020 = vpack.c.b16 %v1018, %v1017
    %v1024 = vsel %vm97, %v1004, 0
    %1026 = vmatprep.subr.bf16.mxu0 0
    %1027 = vmatpush1.bf16.msra.mxu0 %v1019
    %1028 = vmatprep.subr.bf16.mxu0 0
    %1029 = vmatpush1.bf16.msra.mxu0 %v1020
    %1030 = vmatprep.subr.bf16.mxu0 0
    %1031 = vmatpush1.bf16.msra.mxu0 0
    %1032 = vmatprep.subr.bf16.mxu0 0
    %1033 = vmatpush1.bf16.msra.mxu0 0
    %1034 = vmatprep.subr.bf16.mxu0 0
    %1035 = vmatpush1.bf16.msra.mxu0 0
    %1036 = vmatprep.subr.bf16.mxu0 0
    %1037 = vmatpush1.bf16.msra.mxu0 0
    %1038 = vmatprep.subr.bf16.mxu0 0
    %1039 = vmatpush1.bf16.msra.mxu0 0
    %1040 = vmatprep.subr.bf16.mxu0 0
    %1041 = vmatpush1.bf16.msra.mxu0 0
    %1042 = vmatprep.subr.bf16.mxu0 0
    %1043 = vmatpush1.bf16.msra.mxu0 0
    %1044 = vmatprep.subr.bf16.mxu0 0
    %1045 = vmatpush1.bf16.msra.mxu0 0
    %1046 = vmatprep.subr.bf16.mxu0 0
    %1047 = vmatpush1.bf16.msra.mxu0 0
    %1048 = vmatprep.subr.bf16.mxu0 0
    %1049 = vmatpush1.bf16.msra.mxu0 0
    %1050 = vmatprep.subr.bf16.mxu0 0
    %1051 = vmatpush1.bf16.msra.mxu0 0
    %1052 = vmatprep.subr.bf16.mxu0 0
    %1053 = vmatpush1.bf16.msra.mxu0 0
    %1054 = vmatprep.subr.bf16.mxu0 0
    %1055 = vmatpush1.bf16.msra.mxu0 0
    %1056 = vmatprep.subr.bf16.mxu0 0
    %1057 = vmatpush1.bf16.msra.mxu0 0
    %1058 = vmatprep.mubr.bf16.mxu0 0
    %1059 = vmatmul.mubr.bf16.gmra.mrb[0].mxu0 %v1024
    %v1060 = vpop.f32.mrb[0].mxu0
    %v1061 = vadd.f32 0.0, %v1060
    %v1062 = vpop.f32.mrb[0].mxu0
    %v1063 = vpop.f32.mrb[0].mxu0
    %v1064 = vpop.f32.mrb[0].mxu0
    %1065 = vdwg.mxu0
    %v1068 = vunpack.c.l.b16 %v1005
    %v1069 = vunpack.c.l.b16 %v1006
    %v1070 = vpack.c.b16 %v1069, %v1068
    %v1073 = vsel %vm147, %v1002, 0
    %1075 = vmatprep.subr.bf16.mxu0 0
    %1076 = vmatpush1.bf16.msra.mxu0 %v1070
    %1077 = vmatprep.subr.bf16.mxu0 0
    %1078 = vmatpush1.bf16.msra.mxu0 0
    %1079 = vmatprep.subr.bf16.mxu0 0
    %1080 = vmatpush1.bf16.msra.mxu0 0
    %1081 = vmatprep.subr.bf16.mxu0 0
    %1082 = vmatpush1.bf16.msra.mxu0 0
    %1083 = vmatprep.subr.bf16.mxu0 0
    %1084 = vmatpush1.bf16.msra.mxu0 0
    %1085 = vmatprep.subr.bf16.mxu0 0
    %1086 = vmatpush1.bf16.msra.mxu0 0
    %1087 = vmatprep.subr.bf16.mxu0 0
    %1088 = vmatpush1.bf16.msra.mxu0 0
    %1089 = vmatprep.subr.bf16.mxu0 0
    %1090 = vmatpush1.bf16.msra.mxu0 0
    %1091 = vmatprep.subr.bf16.mxu0 0
    %1092 = vmatpush1.bf16.msra.mxu0 0
    %1093 = vmatprep.subr.bf16.mxu0 0
    %1094 = vmatpush1.bf16.msra.mxu0 0
    %1095 = vmatprep.subr.bf16.mxu0 0
    %1096 = vmatpush1.bf16.msra.mxu0 0
    %1097 = vmatprep.subr.bf16.mxu0 0
    %1098 = vmatpush1.bf16.msra.mxu0 0
    %1099 = vmatprep.subr.bf16.mxu0 0
    %1100 = vmatpush1.bf16.msra.mxu0 0
    %1101 = vmatprep.subr.bf16.mxu0 0
    %1102 = vmatpush1.bf16.msra.mxu0 0
    %1103 = vmatprep.subr.bf16.mxu0 0
    %1104 = vmatpush1.bf16.msra.mxu0 0
    %1105 = vmatprep.subr.bf16.mxu0 0
    %1106 = vmatpush1.bf16.msra.mxu0 0
    %1107 = vmatprep.mubr.bf16.mxu0 0
    %1108 = vmatmul.mubr.bf16.gmra.mrb[0].mxu0 %v1073
    %v1109 = vpop.f32.mrb[0].mxu0
    %v1110 = vadd.f32 %v1061, %v1109
    %v1111 = vpop.f32.mrb[0].mxu0
    %v1112 = vpop.f32.mrb[0].mxu0
    %v1113 = vpop.f32.mrb[0].mxu0
    %1114 = vdwg.mxu0
    %v1115 = vld [vmem:[%s3] sm:$0x1]
    %v1117 = vlaneseq
    %v1118 = vshrl.u32 %v1117, 7
    %v1119 = vsub.s32 0, %v1118
    %v1120 = vrot.slane %v1115, %v1119
    %v1122 = vadd.f32 %v1110, %v1120
    %v1123 = vmul.f32 %v1122, 0.5
    %v1124 = vtanh.pop %v1123
    %v1125 = vadd.f32 %v1124, 1.0
    %v1126 = vmul.f32 %v1125, 0.5
    %v1127 = vtanh.pop %v1122
    %v1128 = vld [vmem:[#allocation3] sm:$0x3]
    %1130 = vrot.lane.b32.xlu0 %v1126, 96
    %v1131 = vpop.permute.xlu0 %1130
    %v1133 = vmul.f32 %v1128, %v1131
    %1135 = vrot.lane.b32.xlu0 %v1127, 64
    %v1136 = vpop.permute.xlu0 %1135
    %v1138 = vmul.f32 %v1126, %v1136
    %v1139 = vadd.f32 %v1133, %v1138
    %v1140 = vtanh.pop %v1139
    %1142 = vrot.lane.b32.xlu0 %v1140, 96
    %v1143 = vpop.permute.xlu0 %1142
    %v1145 = vmul.f32 %v1126, %v1143
    %1146 = vst.msk [vmem:[#allocation3] sm:$0x3] %vm222, %v1139
    %1148 = vrot.lane.b32.xlu0 %v1145, 32
    %v1149 = vpop.permute.xlu0 %1148
    %1151 = vst.msk [vmem:[#allocation2] sm:$0x3] %vm222, %v1149
    %s1152 = scalar_lea.vmem [#allocation10], 12
    %1153 = vst.msk [vmem:[%s1152] sm:$0x3] %vm222, %v1149
    %s1154 = scalar_lea.vmem [#allocation4], 14
    %v1155 = vld [vmem:[%s1154] sm:$0x3]
    %v1156 = vpack.c.bf16 %v1155, %v1155
    %v1157 = vld [vmem:[#allocation2] sm:$0x3]
    %v1158 = vpack.c.bf16 %v1157, %v1157
    %v1159 = vld [vmem:[#allocation7] sm:$0xf]
    %v1160 = vld [vmem:[#allocation7 + $0x4] sm:$0xf]
    %v1161 = vld [vmem:[#allocation9] sm:$0xf]
    %v1162 = vld [vmem:[#allocation9 + $0x4] sm:$0xf]
    %v1163 = vld [vmem:[#allocation9 + $0x8] sm:$0xf]
    %v1164 = vld [vmem:[#allocation9 + $0xc] sm:$0xf]
    %v1169 = vunpack.c.l.b16 %v1161
    %v1170 = vunpack.c.l.b16 %v1162
    %v1171 = vunpack.c.l.b16 %v1163
    %v1172 = vunpack.c.l.b16 %v1164
    %v1173 = vpack.c.b16 %v1170, %v1169
    %v1174 = vpack.c.b16 %v1172, %v1171
    %v1178 = vsel %vm97, %v1158, 0
    %1180 = vmatprep.subr.bf16.mxu0 0
    %1181 = vmatpush1.bf16.msra.mxu0 %v1173
    %1182 = vmatprep.subr.bf16.mxu0 0
    %1183 = vmatpush1.bf16.msra.mxu0 %v1174
    %1184 = vmatprep.subr.bf16.mxu0 0
    %1185 = vmatpush1.bf16.msra.mxu0 0
    %1186 = vmatprep.subr.bf16.mxu0 0
    %1187 = vmatpush1.bf16.msra.mxu0 0
    %1188 = vmatprep.subr.bf16.mxu0 0
    %1189 = vmatpush1.bf16.msra.mxu0 0
    %1190 = vmatprep.subr.bf16.mxu0 0
    %1191 = vmatpush1.bf16.msra.mxu0 0
    %1192 = vmatprep.subr.bf16.mxu0 0
    %1193 = vmatpush1.bf16.msra.mxu0 0
    %1194 = vmatprep.subr.bf16.mxu0 0
    %1195 = vmatpush1.bf16.msra.mxu0 0
    %1196 = vmatprep.subr.bf16.mxu0 0
    %1197 = vmatpush1.bf16.msra.mxu0 0
    %1198 = vmatprep.subr.bf16.mxu0 0
    %1199 = vmatpush1.bf16.msra.mxu0 0
    %1200 = vmatprep.subr.bf16.mxu0 0
    %1201 = vmatpush1.bf16.msra.mxu0 0
    %1202 = vmatprep.subr.bf16.mxu0 0
    %1203 = vmatpush1.bf16.msra.mxu0 0
    %1204 = vmatprep.subr.bf16.mxu0 0
    %1205 = vmatpush1.bf16.msra.mxu0 0
    %1206 = vmatprep.subr.bf16.mxu0 0
    %1207 = vmatpush1.bf16.msra.mxu0 0
    %1208 = vmatprep.subr.bf16.mxu0 0
    %1209 = vmatpush1.bf16.msra.mxu0 0
    %1210 = vmatprep.subr.bf16.mxu0 0
    %1211 = vmatpush1.bf16.msra.mxu0 0
    %1212 = vmatprep.mubr.bf16.mxu0 0
    %1213 = vmatmul.mubr.bf16.gmra.mrb[0].mxu0 %v1178
    %v1214 = vpop.f32.mrb[0].mxu0
    %v1215 = vadd.f32 0.0, %v1214
    %v1216 = vpop.f32.mrb[0].mxu0
    %v1217 = vpop.f32.mrb[0].mxu0
    %v1218 = vpop.f32.mrb[0].mxu0
    %1219 = vdwg.mxu0
    %v1222 = vunpack.c.l.b16 %v1159
    %v1223 = vunpack.c.l.b16 %v1160
    %v1224 = vpack.c.b16 %v1223, %v1222
    %v1227 = vsel %vm147, %v1156, 0
    %1229 = vmatprep.subr.bf16.mxu0 0
    %1230 = vmatpush1.bf16.msra.mxu0 %v1224
    %1231 = vmatprep.subr.bf16.mxu0 0
    %1232 = vmatpush1.bf16.msra.mxu0 0
    %1233 = vmatprep.subr.bf16.mxu0 0
    %1234 = vmatpush1.bf16.msra.mxu0 0
    %1235 = vmatprep.subr.bf16.mxu0 0
    %1236 = vmatpush1.bf16.msra.mxu0 0
    %1237 = vmatprep.subr.bf16.mxu0 0
    %1238 = vmatpush1.bf16.msra.mxu0 0
    %1239 = vmatprep.subr.bf16.mxu0 0
    %1240 = vmatpush1.bf16.msra.mxu0 0
    %1241 = vmatprep.subr.bf16.mxu0 0
    %1242 = vmatpush1.bf16.msra.mxu0 0
    %1243 = vmatprep.subr.bf16.mxu0 0
    %1244 = vmatpush1.bf16.msra.mxu0 0
    %1245 = vmatprep.subr.bf16.mxu0 0
    %1246 = vmatpush1.bf16.msra.mxu0 0
    %1247 = vmatprep.subr.bf16.mxu0 0
    %1248 = vmatpush1.bf16.msra.mxu0 0
    %1249 = vmatprep.subr.bf16.mxu0 0
    %1250 = vmatpush1.bf16.msra.mxu0 0
    %1251 = vmatprep.subr.bf16.mxu0 0
    %1252 = vmatpush1.bf16.msra.mxu0 0
    %1253 = vmatprep.subr.bf16.mxu0 0
    %1254 = vmatpush1.bf16.msra.mxu0 0
    %1255 = vmatprep.subr.bf16.mxu0 0
    %1256 = vmatpush1.bf16.msra.mxu0 0
    %1257 = vmatprep.subr.bf16.mxu0 0
    %1258 = vmatpush1.bf16.msra.mxu0 0
    %1259 = vmatprep.subr.bf16.mxu0 0
    %1260 = vmatpush1.bf16.msra.mxu0 0
    %1261 = vmatprep.mubr.bf16.mxu0 0
    %1262 = vmatmul.mubr.bf16.gmra.mrb[0].mxu0 %v1227
    %v1263 = vpop.f32.mrb[0].mxu0
    %v1264 = vadd.f32 %v1215, %v1263
    %v1265 = vpop.f32.mrb[0].mxu0
    %v1266 = vpop.f32.mrb[0].mxu0
    %v1267 = vpop.f32.mrb[0].mxu0
    %1268 = vdwg.mxu0
    %v1269 = vld [vmem:[%s3] sm:$0x1]
    %v1271 = vlaneseq
    %v1272 = vshrl.u32 %v1271, 7
    %v1273 = vsub.s32 0, %v1272
    %v1274 = vrot.slane %v1269, %v1273
    %v1276 = vadd.f32 %v1264, %v1274
    %v1277 = vmul.f32 %v1276, 0.5
    %v1278 = vtanh.pop %v1277
    %v1279 = vadd.f32 %v1278, 1.0
    %v1280 = vmul.f32 %v1279, 0.5
    %v1281 = vtanh.pop %v1276
    %v1282 = vld [vmem:[#allocation3] sm:$0x3]
    %1284 = vrot.lane.b32.xlu0 %v1280, 96
    %v1285 = vpop.permute.xlu0 %1284
    %v1287 = vmul.f32 %v1282, %v1285
    %1289 = vrot.lane.b32.xlu0 %v1281, 64
    %v1290 = vpop.permute.xlu0 %1289
    %v1292 = vmul.f32 %v1280, %v1290
    %v1293 = vadd.f32 %v1287, %v1292
    %v1294 = vtanh.pop %v1293
    %1296 = vrot.lane.b32.xlu0 %v1294, 96
    %v1297 = vpop.permute.xlu0 %1296
    %v1299 = vmul.f32 %v1280, %v1297
    %1300 = vst.msk [vmem:[#allocation3] sm:$0x3] %vm222, %v1293
    %1302 = vrot.lane.b32.xlu0 %v1299, 32
    %v1303 = vpop.permute.xlu0 %1302
    %1305 = vst.msk [vmem:[#allocation2] sm:$0x3] %vm222, %v1303
    %s1306 = scalar_lea.vmem [#allocation10], 14
    %1307 = vst.msk [vmem:[%s1306] sm:$0x3] %vm222, %v1303
    // Predicated region
    $region42: #{tpu_custom_call.1} parent=1 // pred_check
      _
    $region43: #{tpu_custom_call.1} parent=1 // pred_check_branch
      %1309 = sbr.rel (0) target = $region45
    $region44: #{tpu_custom_call.1} parent=1 // pred_region
      %s1311 = ssub.s32 256, 256
      %1312 = vsyncadd [#allocation6], %s1311
      %s1313 = sshll.u32 [#allocation10], 4
      %s1314 = int_to_ptr.vmem [resolvable:$true] %s1313
      %1319 = dma.vmem_to_hbm [thread:$0]  %s1314, 256, %s6, [#allocation6], 32, 32, 2
    $region45: #{tpu_custom_call.1} parent=1 // pred_fallthru
      _
    // Predicated region
    $region46: #{tpu_custom_call.1} parent=1 // pred_check
      _
    $region47: #{tpu_custom_call.1} parent=1 // pred_check_branch
      %1321 = sbr.rel (0) target = $region49
    $region48: #{tpu_custom_call.1} parent=1 // pred_region
      %1322 = dma.done [#allocation6], 256
    $region49: #{tpu_custom_call.1} parent=1 // pred_fallthru
      _
    %1323 = vsyncpa [#allocation5], 1
    %1324 = vsyncpa [#allocation8], 1
    %1325 = vsyncpa [#allocation6], 1

</llo_original>
